<compile_context>
chip_gen: v7x
topology: tpu7x:2x2x1
jax: 0.10.0
libtpu: 0.0.40
codegen_flags: <defaults>
</compile_context>

<pallas_src>
import functools

import jax
import jax.numpy as jnp
from jax.experimental import pallas as pl
from jax.experimental.pallas import tpu as pltpu

_SELU_ALPHA = 1.6732632423543772848170429916717
_SELU_SCALE = 1.0507009873554804934193349852946

_EXP_ACTS = frozenset({'selu', 'elu', 'sigmoid', 'tanh', 'swish', 'softmax'})

# Weight sets up to this size (in their compute dtype) stay fully resident in
# VMEM inside ONE fused kernel; larger models fall back to per-layer tiling.
_FUSED_RESIDENT_BUDGET = 16 << 20   # bytes (conservative for v7x: 64 MiB VMEM)
_VMEM_WORK_BUDGET = 40 << 20        # target in-kernel working-set size


# -----------------------------------------------------------------------------
# Activations (f32 math; mirrors the PyTorch `activation(input, kind)`)
# -----------------------------------------------------------------------------
def _apply_activation(y, kind, *, in_kernel=False):
    if kind == 'selu':
        return _SELU_SCALE * jnp.where(y > 0, y, _SELU_ALPHA * (jnp.exp(y) - 1.0))
    elif kind == 'relu':
        return jnp.maximum(y, 0.0)
    elif kind == 'relu6':
        return jnp.clip(y, 0.0, 6.0)
    elif kind == 'sigmoid':
        return jax.nn.sigmoid(y)
    elif kind == 'tanh':
        return jnp.tanh(y)
    elif kind == 'elu':
        return jnp.where(y > 0, y, jnp.exp(y) - 1.0)
    elif kind == 'lrelu':
        return jnp.where(y > 0, y, 0.01 * y)
    elif kind == 'swish':
        return y * jax.nn.sigmoid(y)
    elif kind == 'softmax':
        # F.softmax(dim=1) on a (batch, features) tensor == last-axis softmax.
        if in_kernel:
            z = y - jnp.max(y, axis=-1, keepdims=True)
            e = jnp.exp(z)
            s = jnp.sum(e, axis=-1, keepdims=True)
            return e * pl.reciprocal(s, approx=True)   # EUP slot, ~free divide
        return jax.nn.softmax(y, axis=-1)
    elif kind == 'none':
        return y
    else:
        raise ValueError('Unknown non-linearity type')


# -----------------------------------------------------------------------------
# Fully-fused kernel: whole layer stack, all weights resident in VMEM,
# batch-only grid.
# -----------------------------------------------------------------------------
def _fused_mlp_kernel(x_ref, *refs, acts):
    o_ref = refs[-1]
    params = refs[:-1]                       # (w0, b0, w1, b1, ...)
    n_layers = len(params) // 2

    h = x_ref[...].astype(jnp.float32)
    for li in range(n_layers):
        w = params[2 * li][...]              # (K, N) weight, compute dtype (bf16)
        b = params[2 * li + 1][...]          # (1, N) bias, f32
        y = jnp.dot(h.astype(w.dtype), w,
                    preferred_element_type=jnp.float32) + b
        h = _apply_activation(y, acts[li], in_kernel=True)
    h = _apply_activation(h, acts[-1], in_kernel=True)   # final `lla`
    o_ref[...] = h.astype(o_ref.dtype)


def _fused_call(x, layers, final_act, *, single_buffer_weights):
    M, K0 = x.shape
    acts = tuple(act for (_, _, act) in layers) + (final_act,)
    n_out = layers[-1][0].shape[1]
    max_w = max([K0] + [w.shape[1] for (w, _, _) in layers])
    itemsize = x.dtype.itemsize

    w_bytes = sum(w.size * w.dtype.itemsize + b.size * b.dtype.itemsize
                  for (w, b, _) in layers)
    resident_w = w_bytes * (1 if single_buffer_weights else 2)

    # --- batch block size ---------------------------------------------------
    # Small batches are weight-DMA bound: one block, no split.  Large batches:
    # 512-row blocks (~85% of HBM roofline), shrunk only if the working set
    # would not fit in the VMEM budget.
    if M <= 512:
        tm = M
    else:
        tm = 512

        def est_rows(tm_):
            return (resident_w
                    + 2 * tm_ * K0 * itemsize       # double-buffered input blk
                    + 2 * tm_ * n_out * itemsize    # double-buffered output blk
                    + 4 * tm_ * max_w * 4)          # live f32 intermediates
        while est_rows(tm) > _VMEM_WORK_BUDGET and tm > 8:
            tm = max(8, tm // 2)
    grid = (pl.cdiv(M, tm),)

    # --- specs ---------------------------------------------------------------
    flat_inputs = [x]
    in_specs = [pl.BlockSpec((tm, K0), lambda i: (i, 0))]
    prev_dim = K0
    for (w_kn, b, _) in layers:
        K, N = w_kn.shape
        assert K == prev_dim, 'layer input width mismatch'
        assert b.shape == (1, N), 'bias width mismatch'
        prev_dim = N
        if single_buffer_weights:
            # Constant block index across the grid -> single-buffer it.
            w_spec = pl.BlockSpec((K, N), lambda i: (0, 0),
                                  pipeline_mode=pl.Buffered(1))
            b_spec = pl.BlockSpec((1, N), lambda i: (0, 0),
                                  pipeline_mode=pl.Buffered(1))
        else:
            w_spec = pl.BlockSpec((K, N), lambda i: (0, 0))
            b_spec = pl.BlockSpec((1, N), lambda i: (0, 0))
        flat_inputs += [w_kn, b]
        in_specs += [w_spec, b_spec]

    out_spec = pl.BlockSpec((tm, n_out), lambda i: (i, 0))

    # --- cost estimate & VMEM budget -----------------------------------------
    flops = 0
    trans = 0
    for (w_kn, _, act) in layers:
        K, N = w_kn.shape
        flops += 2 * M * K * N
        if act in _EXP_ACTS:
            trans += M * N
    if final_act in _EXP_ACTS:
        trans += M * n_out
    bytes_accessed = x.size * itemsize + w_bytes + M * n_out * itemsize

    est_vmem = (resident_w + 2 * tm * K0 * itemsize
                + 2 * tm * n_out * itemsize + 4 * tm * max_w * 4)
    vmem_limit = int(min(48 << 20, max(32 << 20, est_vmem + (8 << 20))))

    # TODO(synk): for multi-MiB weight sets on v5e, overlap the weight DMA with
    # compute (memory_space=pl.ANY + per-layer make_async_copy) instead of
    # relying on the fully-resident fetch happening before the first step.
    return pl.pallas_call(
        functools.partial(_fused_mlp_kernel, acts=acts),
        out_shape=jax.ShapeDtypeStruct((M, n_out), x.dtype),
        grid_spec=pltpu.PrefetchScalarGridSpec(
            num_scalar_prefetch=0,
            grid=grid,
            in_specs=in_specs,
            out_specs=out_spec,
        ),
        compiler_params=pltpu.CompilerParams(
            dimension_semantics=("parallel",),
            vmem_limit_bytes=vmem_limit),
        cost_estimate=pl.CostEstimate(flops=flops, transcendentals=trans,
                                      bytes_accessed=bytes_accessed),
    )(*flat_inputs)


# -----------------------------------------------------------------------------
# Tiled per-layer fallback (weights too large to keep fully resident in VMEM).
# Tiles the batch and the output-feature dims; keeps the contraction dim whole.
# -----------------------------------------------------------------------------
def _tiled_layer_kernel(x_ref, w_ref, b_ref, o_ref, *, kinds):
    w = w_ref[...]
    y = jnp.dot(x_ref[...].astype(w.dtype), w,
                preferred_element_type=jnp.float32) + b_ref[...]
    for kind in kinds:
        y = _apply_activation(y, kind, in_kernel=True)
    o_ref[...] = y.astype(o_ref.dtype)


def _tiled_linear_act(x, w, b, kinds):
    M, K = x.shape
    Kw, N = w.shape
    assert K == Kw, 'layer input width mismatch'
    assert b.shape == (1, N), 'bias width mismatch'
    itemsize = x.dtype.itemsize

    # softmax needs the whole feature row inside one tile.
    tn = N if ('softmax' in kinds or N <= 512) else 512
    tm = M if M <= 256 else 256

    def est(tm_, tn_):
        return (2 * tm_ * K * itemsize            # input block (double-buffered)
                + 2 * K * tn_ * w.dtype.itemsize  # weight block
                + 2 * tm_ * tn_ * itemsize        # output block
                + 2 * tn_ * 4                     # bias block
                + 4 * tm_ * tn_ * 4)              # live f32 intermediates

    while est(tm, tn) > _VMEM_WORK_BUDGET and tn > 128 and 'softmax' not in kinds:
        tn = max(128, tn // 2)
    while est(tm, tn) > _VMEM_WORK_BUDGET and tm > 8:
        tm = max(8, (tm // 2) // 8 * 8)
    # TODO(synk): if a single (K, tn) weight slab still exceeds VMEM (extremely
    # wide contraction dim), a K-tiled accumulator variant would be needed.

    grid = (pl.cdiv(M, tm), pl.cdiv(N, tn))
    flops = 2 * M * K * N
    trans = M * N if any(k in _EXP_ACTS for k in kinds) else 0
    bytes_accessed = (M * K * itemsize + K * N * w.dtype.itemsize
                      + N * 4 + M * N * itemsize)
    vmem_limit = int(min(48 << 20, max(32 << 20, est(tm, tn) + (8 << 20))))

    return pl.pallas_call(
        functools.partial(_tiled_layer_kernel, kinds=kinds),
        out_shape=jax.ShapeDtypeStruct((M, N), x.dtype),
        grid_spec=pltpu.PrefetchScalarGridSpec(
            num_scalar_prefetch=0,
            grid=grid,
            in_specs=[
                pl.BlockSpec((tm, K), lambda i, j: (i, 0)),
                pl.BlockSpec((K, tn), lambda i, j: (0, j)),
                pl.BlockSpec((1, tn), lambda i, j: (0, j)),
            ],
            out_specs=pl.BlockSpec((tm, tn), lambda i, j: (i, j)),
        ),
        compiler_params=pltpu.CompilerParams(
            dimension_semantics=("parallel", "parallel"),
            vmem_limit_bytes=vmem_limit),
        cost_estimate=pl.CostEstimate(flops=flops, transcendentals=trans,
                                      bytes_accessed=bytes_accessed),
    )(x, w, b)


def _tiled_mlp_forward(x, layers, final_act):
    h = x
    n = len(layers)
    for li, (w, b, act) in enumerate(layers):
        kinds = (act, final_act) if li == n - 1 else (act,)
        kinds = tuple(k for k in kinds if k != 'none') or ('none',)
        h = _tiled_linear_act(h, w, b, kinds)
    return h


# -----------------------------------------------------------------------------
# Public entry point
# -----------------------------------------------------------------------------
def fused_mlp_forward(x, layers, final_act='none', *,
                      max_resident_weight_bytes=_FUSED_RESIDENT_BUDGET):
    """Run a stack of `h = act(h @ W + b)` layers on TPU via Pallas.

    layers: list of (w_kn, b, act) with w_kn in (in_features, out_features)
    layout (compute dtype), b of shape (1, out_features) f32.
    """
    assert layers, 'need at least one layer'
    w_bytes = sum(w.size * w.dtype.itemsize + b.size * b.dtype.itemsize
                  for (w, b, _) in layers)
    if w_bytes > max_resident_weight_bytes:
        # Weights too big to keep resident in VMEM -> per-layer tiled kernels.
        return _tiled_mlp_forward(x, layers, final_act)
    try:
        return _fused_call(x, layers, final_act, single_buffer_weights=True)
    except Exception:
        # pl.Buffered(1) (single-buffered constant blocks) unavailable on this
        # jax build -> fall back to default double-buffered specs.
        return _fused_call(x, layers, final_act, single_buffer_weights=False)


# -----------------------------------------------------------------------------
# AsymmetricAutoEncoder in JAX; forward == one fused Pallas kernel call.
# -----------------------------------------------------------------------------
def _xavier_uniform(key, shape):
    fan_out, fan_in = shape
    bound = (6.0 / (fan_in + fan_out)) ** 0.5
    return jax.random.uniform(key, shape, jnp.float32, -bound, bound)


class AsymmetricAutoEncoderPallas:
    def __init__(self, layer_sizes, nl_type='selu', is_constrained=True,
                 dp_drop_prob=0.0, last_layer_activations=True, lla='none',
                 seed=0, compute_dtype=jnp.bfloat16):
        self._nl_type = nl_type
        self._dp_drop_prob = dp_drop_prob
        self._last_layer_activations = last_layer_activations
        self._last = 0
        self.lla = lla
        self.is_constrained = is_constrained
        self.compute_dtype = compute_dtype

        key = jax.random.PRNGKey(seed)
        n_enc = len(layer_sizes) - 1
        keys = jax.random.split(key, n_enc + 1)

        # Master encoder weights in PyTorch layout (out, in), f32 ...
        self.encode_w = [
            _xavier_uniform(keys[i], (layer_sizes[i + 1], layer_sizes[i]))
            for i in range(n_enc)
        ]
        # ... and compute copies, cast to bf16 exactly once:
        #   (in, out) layout for the encoder matmul;
        #   (out, in) used directly by the constrained decoder because
        #   F.linear(z, w.transpose(0,1), b) == z @ w  ->  no per-call transposes.
        self.encode_wt_c = [jnp.asarray(w.T, dtype=compute_dtype)
                            for w in self.encode_w]
        self.encode_w_c = [jnp.asarray(w, dtype=compute_dtype)
                           for w in self.encode_w]
        # Biases stored once as (1, N) f32 rows.
        self.encode_b = [jnp.zeros((1, layer_sizes[i + 1]), jnp.float32)
                         for i in range(n_enc)]
        if not is_constrained:
            self.decode_w = [
                _xavier_uniform(keys[-1], (layer_sizes[0], layer_sizes[-1]))]
            self.decode_wt_c = [jnp.asarray(w.T, dtype=compute_dtype)
                                for w in self.decode_w]
        self.decode_b = [jnp.zeros((1, layer_sizes[0]), jnp.float32)]
        # TODO(synk): dropout (dp_drop_prob > 0) not implemented in-kernel
        # (would use pltpu.prng_seed / prng_random_bits); default 0.0 is exact.

    # --- layer-stack builders -------------------------------------------------
    def _encoder_layers(self):
        return [(wt, b, self._nl_type)
                for wt, b in zip(self.encode_wt_c, self.encode_b)]

    def _decoder_layers(self):
        layers = []
        if self.is_constrained:
            # NOTE: like the PyTorch module, a constrained decoder with more
            # than one encoder layer has only decode_b[0] (mismatched widths);
            # only the single-layer constrained decoder is well-defined.
            for ind, w in enumerate(list(reversed(self.encode_w_c))):
                act = (self._nl_type
                       if ind != self._last or self._last_layer_activations
                       else 'none')
                layers.append((w, self.decode_b[ind], act))
        else:
            for ind, wt in enumerate(self.decode_wt_c):
                act = (self._nl_type
                       if ind != self._last or self._last_layer_activations
                       else 'none')
                layers.append((wt, self.decode_b[ind], act))
        return layers

    # --- forward pass -----------------------------------------------------------
    def encode(self, x):
        return fused_mlp_forward(x, self._encoder_layers())

    def decode(self, z):
        return fused_mlp_forward(z, self._decoder_layers())

    def forward(self, x):
        # Whole autoencoder (encoder + decoder + final `lla`) in ONE kernel.
        return fused_mlp_forward(
            x, self._encoder_layers() + self._decoder_layers(),
            final_act=self.lla)


# -----------------------------------------------------------------------------
# Pure-JAX reference mirroring the kernel math (bf16 dots, f32 bias/activation)
# -----------------------------------------------------------------------------
def _reference_forward(model, x):
    layers = model._encoder_layers() + model._decoder_layers()
    h = x.astype(jnp.float32)
    for (w, b, act) in layers:
        y = jnp.dot(h.astype(w.dtype), w,
                    preferred_element_type=jnp.float32) + b
        h = _apply_activation(y, act)
    return _apply_activation(h, model.lla)


if __name__ == "__main__":
    # --- test 1: asymmetric config (single-layer decoder), unconstrained -----
    layer_sizes = [512, 256, 128]
    batch = 16
    model = AsymmetricAutoEncoderPallas(
        layer_sizes, nl_type='selu', is_constrained=False,
        dp_drop_prob=0.0, last_layer_activations=True, lla='none', seed=0)

    x = jax.random.normal(jax.random.PRNGKey(0), (batch, layer_sizes[0]),
                          jnp.float32)
    out = jax.block_until_ready(model.forward(x))
    ref = _reference_forward(model, x)
    assert out.shape == (batch, layer_sizes[0])
    assert jnp.allclose(out, ref, atol=5e-3, rtol=5e-3), 'mismatch (test 1)'

    # --- test 2: constrained single-encoder-layer config, exercises
    #             last_layer_activations=False and a final `lla` activation ---
    model2 = AsymmetricAutoEncoderPallas(
        [256, 128], nl_type='tanh', is_constrained=True,
        dp_drop_prob=0.0, last_layer_activations=False, lla='sigmoid', seed=1)
    x2 = jax.random.normal(jax.random.PRNGKey(1), (8, 256), jnp.float32)
    out2 = jax.block_until_ready(model2.forward(x2))
    ref2 = _reference_forward(model2, x2)
    assert out2.shape == (8, 256)
    assert jnp.allclose(out2, ref2, atol=5e-3, rtol=5e-3), 'mismatch (test 2)'

    # --- test 3: force the tiled per-layer fallback (path used when weights
    #             are too large to keep resident in VMEM) ---------------------
    layers1 = model._encoder_layers() + model._decoder_layers()
    out3 = jax.block_until_ready(
        fused_mlp_forward(x, layers1, final_act=model.lla,
                          max_resident_weight_bytes=0))
    assert out3.shape == (batch, layer_sizes[0])
    assert jnp.allclose(out3, ref, atol=5e-3, rtol=5e-3), 'mismatch (test 3)'

    # --- test 4: large batch -> multi-block "parallel" grid (512-row tiles) --
    x4 = jax.random.normal(jax.random.PRNGKey(2), (1024, layer_sizes[0]),
                           jnp.float32)
    out4 = jax.block_until_ready(model.forward(x4))
    ref4 = _reference_forward(model, x4)
    assert out4.shape == (1024, layer_sizes[0])
    assert jnp.allclose(out4, ref4, atol=5e-3, rtol=5e-3), 'mismatch (test 4)'

    print("KERNEL_OK")
</pallas_src>

<mosaic_0001>
module attributes {stable_mosaic.version = 11 : i64} {
  func.func @_fused_mlp_kernel(%arg0: i32, %arg1: memref<16x512xf32, #tpu.memory_space<vmem>>, %arg2: memref<512x256xbf16, #tpu.memory_space<vmem>>, %arg3: memref<1x256xf32, #tpu.memory_space<vmem>>, %arg4: memref<256x128xbf16, #tpu.memory_space<vmem>>, %arg5: memref<1x128xf32, #tpu.memory_space<vmem>>, %arg6: memref<128x512xbf16, #tpu.memory_space<vmem>>, %arg7: memref<1x512xf32, #tpu.memory_space<vmem>>, %arg8: memref<16x512xf32, #tpu.memory_space<vmem>>) attributes {dimension_semantics = [#tpu.dimension_semantics<parallel>], iteration_bounds = array<i64: 1>, scalar_prefetch = 0 : i64, scratch_operands = 0 : i64, tpu.core_type = #tpu.core_type<tc>, window_params = [{transform_indices = @transform_0, window_bounds = array<i64: 16, 512>}, {pipeline_mode = #tpu.pipeline_mode<synchronous>, transform_indices = @transform_1, window_bounds = array<i64: 512, 256>}, {pipeline_mode = #tpu.pipeline_mode<synchronous>, transform_indices = @transform_2, window_bounds = array<i64: 1, 256>}, {pipeline_mode = #tpu.pipeline_mode<synchronous>, transform_indices = @transform_3, window_bounds = array<i64: 256, 128>}, {pipeline_mode = #tpu.pipeline_mode<synchronous>, transform_indices = @transform_4, window_bounds = array<i64: 1, 128>}, {pipeline_mode = #tpu.pipeline_mode<synchronous>, transform_indices = @transform_5, window_bounds = array<i64: 128, 512>}, {pipeline_mode = #tpu.pipeline_mode<synchronous>, transform_indices = @transform_6, window_bounds = array<i64: 1, 512>}, {transform_indices = @transform_7, window_bounds = array<i64: 16, 512>}]} {
    %c0 = arith.constant 0 : index
    %c0_0 = arith.constant 0 : index
    %0 = vector.load %arg1[%c0, %c0_0] : memref<16x512xf32, #tpu.memory_space<vmem>>, vector<16x512xf32>
    %c0_1 = arith.constant 0 : index
    %c0_2 = arith.constant 0 : index
    %1 = vector.load %arg2[%c0_1, %c0_2] : memref<512x256xbf16, #tpu.memory_space<vmem>>, vector<512x256xbf16>
    %c0_3 = arith.constant 0 : index
    %c0_4 = arith.constant 0 : index
    %2 = vector.load %arg3[%c0_3, %c0_4] : memref<1x256xf32, #tpu.memory_space<vmem>>, vector<1x256xf32>
    %3 = arith.truncf %0 : vector<16x512xf32> to vector<16x512xbf16>
    %cst = arith.constant dense<0.000000e+00> : vector<16x256xf32>
    %4 = tpu.matmul %3, %1, %cst {dimension_numbers = #tpu.dot_dimension_numbers<[1], [0], [0], [1], [0, 0, 1, 1], [], []>} : vector<16x512xbf16>, vector<512x256xbf16>, vector<16x256xf32> -> vector<16x256xf32>
    %5 = vector.broadcast %2 : vector<1x256xf32> to vector<16x256xf32>
    %6 = arith.addf %4, %5 : vector<16x256xf32>
    %cst_5 = arith.constant 0.000000e+00 : f32
    %7 = vector.broadcast %cst_5 : f32 to vector<16x256xf32>
    %8 = arith.cmpf ogt, %6, %7 : vector<16x256xf32>
    %9 = math.exp %6 : vector<16x256xf32>
    %cst_6 = arith.constant 1.000000e+00 : f32
    %10 = vector.broadcast %cst_6 : f32 to vector<16x256xf32>
    %11 = arith.subf %9, %10 : vector<16x256xf32>
    %cst_7 = arith.constant 1.67326319 : f32
    %12 = vector.broadcast %cst_7 : f32 to vector<16x256xf32>
    %13 = arith.mulf %12, %11 : vector<16x256xf32>
    %14 = arith.select %8, %6, %13 : vector<16x256xi1>, vector<16x256xf32>
    %cst_8 = arith.constant 1.05070102 : f32
    %15 = vector.broadcast %cst_8 : f32 to vector<16x256xf32>
    %16 = arith.mulf %15, %14 : vector<16x256xf32>
    %c0_9 = arith.constant 0 : index
    %c0_10 = arith.constant 0 : index
    %17 = vector.load %arg4[%c0_9, %c0_10] : memref<256x128xbf16, #tpu.memory_space<vmem>>, vector<256x128xbf16>
    %c0_11 = arith.constant 0 : index
    %c0_12 = arith.constant 0 : index
    %18 = vector.load %arg5[%c0_11, %c0_12] : memref<1x128xf32, #tpu.memory_space<vmem>>, vector<1x128xf32>
    %19 = arith.truncf %16 : vector<16x256xf32> to vector<16x256xbf16>
    %cst_13 = arith.constant dense<0.000000e+00> : vector<16x128xf32>
    %20 = tpu.matmul %19, %17, %cst_13 {dimension_numbers = #tpu.dot_dimension_numbers<[1], [0], [0], [1], [0, 0, 1, 1], [], []>} : vector<16x256xbf16>, vector<256x128xbf16>, vector<16x128xf32> -> vector<16x128xf32>
    %21 = vector.broadcast %18 : vector<1x128xf32> to vector<16x128xf32>
    %22 = arith.addf %20, %21 : vector<16x128xf32>
    %cst_14 = arith.constant 0.000000e+00 : f32
    %23 = vector.broadcast %cst_14 : f32 to vector<16x128xf32>
    %24 = arith.cmpf ogt, %22, %23 : vector<16x128xf32>
    %25 = math.exp %22 : vector<16x128xf32>
    %cst_15 = arith.constant 1.000000e+00 : f32
    %26 = vector.broadcast %cst_15 : f32 to vector<16x128xf32>
    %27 = arith.subf %25, %26 : vector<16x128xf32>
    %cst_16 = arith.constant 1.67326319 : f32
    %28 = vector.broadcast %cst_16 : f32 to vector<16x128xf32>
    %29 = arith.mulf %28, %27 : vector<16x128xf32>
    %30 = arith.select %24, %22, %29 : vector<16x128xi1>, vector<16x128xf32>
    %cst_17 = arith.constant 1.05070102 : f32
    %31 = vector.broadcast %cst_17 : f32 to vector<16x128xf32>
    %32 = arith.mulf %31, %30 : vector<16x128xf32>
    %c0_18 = arith.constant 0 : index
    %c0_19 = arith.constant 0 : index
    %33 = vector.load %arg6[%c0_18, %c0_19] : memref<128x512xbf16, #tpu.memory_space<vmem>>, vector<128x512xbf16>
    %c0_20 = arith.constant 0 : index
    %c0_21 = arith.constant 0 : index
    %34 = vector.load %arg7[%c0_20, %c0_21] : memref<1x512xf32, #tpu.memory_space<vmem>>, vector<1x512xf32>
    %35 = arith.truncf %32 : vector<16x128xf32> to vector<16x128xbf16>
    %cst_22 = arith.constant dense<0.000000e+00> : vector<16x512xf32>
    %36 = tpu.matmul %35, %33, %cst_22 {dimension_numbers = #tpu.dot_dimension_numbers<[1], [0], [0], [1], [0, 0, 1, 1], [], []>} : vector<16x128xbf16>, vector<128x512xbf16>, vector<16x512xf32> -> vector<16x512xf32>
    %37 = vector.broadcast %34 : vector<1x512xf32> to vector<16x512xf32>
    %38 = arith.addf %36, %37 : vector<16x512xf32>
    %cst_23 = arith.constant 0.000000e+00 : f32
    %39 = vector.broadcast %cst_23 : f32 to vector<16x512xf32>
    %40 = arith.cmpf ogt, %38, %39 : vector<16x512xf32>
    %41 = math.exp %38 : vector<16x512xf32>
    %cst_24 = arith.constant 1.000000e+00 : f32
    %42 = vector.broadcast %cst_24 : f32 to vector<16x512xf32>
    %43 = arith.subf %41, %42 : vector<16x512xf32>
    %cst_25 = arith.constant 1.67326319 : f32
    %44 = vector.broadcast %cst_25 : f32 to vector<16x512xf32>
    %45 = arith.mulf %44, %43 : vector<16x512xf32>
    %46 = arith.select %40, %38, %45 : vector<16x512xi1>, vector<16x512xf32>
    %cst_26 = arith.constant 1.05070102 : f32
    %47 = vector.broadcast %cst_26 : f32 to vector<16x512xf32>
    %48 = arith.mulf %47, %46 : vector<16x512xf32>
    %c0_27 = arith.constant 0 : index
    %c0_28 = arith.constant 0 : index
    %49 = vector.load %arg8[%c0_27, %c0_28] : memref<16x512xf32, #tpu.memory_space<vmem>>, vector<16x512xf32>
    tpu.vector_store %arg8[%c0_27, %c0_28], %48 {strides = array<i32>} : memref<16x512xf32, #tpu.memory_space<vmem>>, vector<16x512xf32>,
    return
  }
  func.func @transform_0(%arg0: i32) -> (i32, i32) {
    %c0_i32 = arith.constant 0 : i32
    %c0_i32_0 = arith.constant 0 : i32
    return %arg0, %c0_i32 : i32, i32
  }
  func.func @transform_1(%arg0: i32) -> (i32, i32) {
    %c0_i32 = arith.constant 0 : i32
    %c0_i32_0 = arith.constant 0 : i32
    %c0_i32_1 = arith.constant 0 : i32
    return %c0_i32, %c0_i32_0 : i32, i32
  }
  func.func @transform_2(%arg0: i32) -> (i32, i32) {
    %c0_i32 = arith.constant 0 : i32
    %c0_i32_0 = arith.constant 0 : i32
    %c0_i32_1 = arith.constant 0 : i32
    return %c0_i32, %c0_i32_0 : i32, i32
  }
  func.func @transform_3(%arg0: i32) -> (i32, i32) {
    %c0_i32 = arith.constant 0 : i32
    %c0_i32_0 = arith.constant 0 : i32
    %c0_i32_1 = arith.constant 0 : i32
    return %c0_i32, %c0_i32_0 : i32, i32
  }
  func.func @transform_4(%arg0: i32) -> (i32, i32) {
    %c0_i32 = arith.constant 0 : i32
    %c0_i32_0 = arith.constant 0 : i32
    %c0_i32_1 = arith.constant 0 : i32
    return %c0_i32, %c0_i32_0 : i32, i32
  }
  func.func @transform_5(%arg0: i32) -> (i32, i32) {
    %c0_i32 = arith.constant 0 : i32
    %c0_i32_0 = arith.constant 0 : i32
    %c0_i32_1 = arith.constant 0 : i32
    return %c0_i32, %c0_i32_0 : i32, i32
  }
  func.func @transform_6(%arg0: i32) -> (i32, i32) {
    %c0_i32 = arith.constant 0 : i32
    %c0_i32_0 = arith.constant 0 : i32
    %c0_i32_1 = arith.constant 0 : i32
    return %c0_i32, %c0_i32_0 : i32, i32
  }
  func.func @transform_7(%arg0: i32) -> (i32, i32) {
    %c0_i32 = arith.constant 0 : i32
    %c0_i32_0 = arith.constant 0 : i32
    return %arg0, %c0_i32 : i32, i32
  }
}

module attributes {stable_mosaic.version = 11 : i64} {
  func.func @_fused_mlp_kernel(%arg0: i32, %arg1: memref<16x512xf32, #tpu.memory_space<vmem>>, %arg2: memref<512x256xbf16, #tpu.memory_space<vmem>>, %arg3: memref<1x256xf32, #tpu.memory_space<vmem>>, %arg4: memref<256x128xbf16, #tpu.memory_space<vmem>>, %arg5: memref<1x128xf32, #tpu.memory_space<vmem>>, %arg6: memref<128x512xbf16, #tpu.memory_space<vmem>>, %arg7: memref<1x512xf32, #tpu.memory_space<vmem>>, %arg8: memref<16x512xf32, #tpu.memory_space<vmem>>) attributes {dimension_semantics = [#tpu.dimension_semantics<parallel>], iteration_bounds = array<i64: 1>, scalar_prefetch = 0 : i64, scratch_operands = 0 : i64, tpu.core_type = #tpu.core_type<tc>, window_params = [{transform_indices = @transform_0, window_bounds = array<i64: 16, 512>}, {pipeline_mode = #tpu.pipeline_mode<synchronous>, transform_indices = @transform_1, window_bounds = array<i64: 512, 256>}, {pipeline_mode = #tpu.pipeline_mode<synchronous>, transform_indices = @transform_2, window_bounds = array<i64: 1, 256>}, {pipeline_mode = #tpu.pipeline_mode<synchronous>, transform_indices = @transform_3, window_bounds = array<i64: 256, 128>}, {pipeline_mode = #tpu.pipeline_mode<synchronous>, transform_indices = @transform_4, window_bounds = array<i64: 1, 128>}, {pipeline_mode = #tpu.pipeline_mode<synchronous>, transform_indices = @transform_5, window_bounds = array<i64: 128, 512>}, {pipeline_mode = #tpu.pipeline_mode<synchronous>, transform_indices = @transform_6, window_bounds = array<i64: 1, 512>}, {transform_indices = @transform_7, window_bounds = array<i64: 16, 512>}]} {
    %c0 = arith.constant 0 : index
    %c0_0 = arith.constant 0 : index
    %0 = vector.load %arg1[%c0, %c0_0] : memref<16x512xf32, #tpu.memory_space<vmem>>, vector<16x512xf32>
    %c0_1 = arith.constant 0 : index
    %c0_2 = arith.constant 0 : index
    %1 = vector.load %arg2[%c0_1, %c0_2] : memref<512x256xbf16, #tpu.memory_space<vmem>>, vector<512x256xbf16>
    %c0_3 = arith.constant 0 : index
    %c0_4 = arith.constant 0 : index
    %2 = vector.load %arg3[%c0_3, %c0_4] : memref<1x256xf32, #tpu.memory_space<vmem>>, vector<1x256xf32>
    %3 = arith.truncf %0 : vector<16x512xf32> to vector<16x512xbf16>
    %cst = arith.constant dense<0.000000e+00> : vector<16x256xf32>
    %4 = tpu.matmul %3, %1, %cst {dimension_numbers = #tpu.dot_dimension_numbers<[1], [0], [0], [1], [0, 0, 1, 1], [], []>} : vector<16x512xbf16>, vector<512x256xbf16>, vector<16x256xf32> -> vector<16x256xf32>
    %5 = vector.broadcast %2 : vector<1x256xf32> to vector<16x256xf32>
    %6 = arith.addf %4, %5 : vector<16x256xf32>
    %cst_5 = arith.constant 0.000000e+00 : f32
    %7 = vector.broadcast %cst_5 : f32 to vector<16x256xf32>
    %8 = arith.cmpf ogt, %6, %7 : vector<16x256xf32>
    %9 = math.exp %6 : vector<16x256xf32>
    %cst_6 = arith.constant 1.000000e+00 : f32
    %10 = vector.broadcast %cst_6 : f32 to vector<16x256xf32>
    %11 = arith.subf %9, %10 : vector<16x256xf32>
    %cst_7 = arith.constant 1.67326319 : f32
    %12 = vector.broadcast %cst_7 : f32 to vector<16x256xf32>
    %13 = arith.mulf %12, %11 : vector<16x256xf32>
    %14 = arith.select %8, %6, %13 : vector<16x256xi1>, vector<16x256xf32>
    %cst_8 = arith.constant 1.05070102 : f32
    %15 = vector.broadcast %cst_8 : f32 to vector<16x256xf32>
    %16 = arith.mulf %15, %14 : vector<16x256xf32>
    %c0_9 = arith.constant 0 : index
    %c0_10 = arith.constant 0 : index
    %17 = vector.load %arg4[%c0_9, %c0_10] : memref<256x128xbf16, #tpu.memory_space<vmem>>, vector<256x128xbf16>
    %c0_11 = arith.constant 0 : index
    %c0_12 = arith.constant 0 : index
    %18 = vector.load %arg5[%c0_11, %c0_12] : memref<1x128xf32, #tpu.memory_space<vmem>>, vector<1x128xf32>
    %19 = arith.truncf %16 : vector<16x256xf32> to vector<16x256xbf16>
    %cst_13 = arith.constant dense<0.000000e+00> : vector<16x128xf32>
    %20 = tpu.matmul %19, %17, %cst_13 {dimension_numbers = #tpu.dot_dimension_numbers<[1], [0], [0], [1], [0, 0, 1, 1], [], []>} : vector<16x256xbf16>, vector<256x128xbf16>, vector<16x128xf32> -> vector<16x128xf32>
    %21 = vector.broadcast %18 : vector<1x128xf32> to vector<16x128xf32>
    %22 = arith.addf %20, %21 : vector<16x128xf32>
    %cst_14 = arith.constant 0.000000e+00 : f32
    %23 = vector.broadcast %cst_14 : f32 to vector<16x128xf32>
    %24 = arith.cmpf ogt, %22, %23 : vector<16x128xf32>
    %25 = math.exp %22 : vector<16x128xf32>
    %cst_15 = arith.constant 1.000000e+00 : f32
    %26 = vector.broadcast %cst_15 : f32 to vector<16x128xf32>
    %27 = arith.subf %25, %26 : vector<16x128xf32>
    %cst_16 = arith.constant 1.67326319 : f32
    %28 = vector.broadcast %cst_16 : f32 to vector<16x128xf32>
    %29 = arith.mulf %28, %27 : vector<16x128xf32>
    %30 = arith.select %24, %22, %29 : vector<16x128xi1>, vector<16x128xf32>
    %cst_17 = arith.constant 1.05070102 : f32
    %31 = vector.broadcast %cst_17 : f32 to vector<16x128xf32>
    %32 = arith.mulf %31, %30 : vector<16x128xf32>
    %c0_18 = arith.constant 0 : index
    %c0_19 = arith.constant 0 : index
    %33 = vector.load %arg6[%c0_18, %c0_19] : memref<128x512xbf16, #tpu.memory_space<vmem>>, vector<128x512xbf16>
    %c0_20 = arith.constant 0 : index
    %c0_21 = arith.constant 0 : index
    %34 = vector.load %arg7[%c0_20, %c0_21] : memref<1x512xf32, #tpu.memory_space<vmem>>, vector<1x512xf32>
    %35 = arith.truncf %32 : vector<16x128xf32> to vector<16x128xbf16>
    %cst_22 = arith.constant dense<0.000000e+00> : vector<16x512xf32>
    %36 = tpu.matmul %35, %33, %cst_22 {dimension_numbers = #tpu.dot_dimension_numbers<[1], [0], [0], [1], [0, 0, 1, 1], [], []>} : vector<16x128xbf16>, vector<128x512xbf16>, vector<16x512xf32> -> vector<16x512xf32>
    %37 = vector.broadcast %34 : vector<1x512xf32> to vector<16x512xf32>
    %38 = arith.addf %36, %37 : vector<16x512xf32>
    %cst_23 = arith.constant 0.000000e+00 : f32
    %39 = vector.broadcast %cst_23 : f32 to vector<16x512xf32>
    %40 = arith.cmpf ogt, %38, %39 : vector<16x512xf32>
    %41 = math.exp %38 : vector<16x512xf32>
    %cst_24 = arith.constant 1.000000e+00 : f32
    %42 = vector.broadcast %cst_24 : f32 to vector<16x512xf32>
    %43 = arith.subf %41, %42 : vector<16x512xf32>
    %cst_25 = arith.constant 1.67326319 : f32
    %44 = vector.broadcast %cst_25 : f32 to vector<16x512xf32>
    %45 = arith.mulf %44, %43 : vector<16x512xf32>
    %46 = arith.select %40, %38, %45 : vector<16x512xi1>, vector<16x512xf32>
    %cst_26 = arith.constant 1.05070102 : f32
    %47 = vector.broadcast %cst_26 : f32 to vector<16x512xf32>
    %48 = arith.mulf %47, %46 : vector<16x512xf32>
    %c0_27 = arith.constant 0 : index
    %c0_28 = arith.constant 0 : index
    %49 = vector.load %arg8[%c0_27, %c0_28] : memref<16x512xf32, #tpu.memory_space<vmem>>, vector<16x512xf32>
    tpu.vector_store %arg8[%c0_27, %c0_28], %48 {strides = array<i32>} : memref<16x512xf32, #tpu.memory_space<vmem>>, vector<16x512xf32>,
    return
  }
  func.func @transform_0(%arg0: i32) -> (i32, i32) {
    %c0_i32 = arith.constant 0 : i32
    %c0_i32_0 = arith.constant 0 : i32
    return %arg0, %c0_i32 : i32, i32
  }
  func.func @transform_1(%arg0: i32) -> (i32, i32) {
    %c0_i32 = arith.constant 0 : i32
    %c0_i32_0 = arith.constant 0 : i32
    %c0_i32_1 = arith.constant 0 : i32
    return %c0_i32, %c0_i32_0 : i32, i32
  }
  func.func @transform_2(%arg0: i32) -> (i32, i32) {
    %c0_i32 = arith.constant 0 : i32
    %c0_i32_0 = arith.constant 0 : i32
    %c0_i32_1 = arith.constant 0 : i32
    return %c0_i32, %c0_i32_0 : i32, i32
  }
  func.func @transform_3(%arg0: i32) -> (i32, i32) {
    %c0_i32 = arith.constant 0 : i32
    %c0_i32_0 = arith.constant 0 : i32
    %c0_i32_1 = arith.constant 0 : i32
    return %c0_i32, %c0_i32_0 : i32, i32
  }
  func.func @transform_4(%arg0: i32) -> (i32, i32) {
    %c0_i32 = arith.constant 0 : i32
    %c0_i32_0 = arith.constant 0 : i32
    %c0_i32_1 = arith.constant 0 : i32
    return %c0_i32, %c0_i32_0 : i32, i32
  }
  func.func @transform_5(%arg0: i32) -> (i32, i32) {
    %c0_i32 = arith.constant 0 : i32
    %c0_i32_0 = arith.constant 0 : i32
    %c0_i32_1 = arith.constant 0 : i32
    return %c0_i32, %c0_i32_0 : i32, i32
  }
  func.func @transform_6(%arg0: i32) -> (i32, i32) {
    %c0_i32 = arith.constant 0 : i32
    %c0_i32_0 = arith.constant 0 : i32
    %c0_i32_1 = arith.constant 0 : i32
    return %c0_i32, %c0_i32_0 : i32, i32
  }
  func.func @transform_7(%arg0: i32) -> (i32, i32) {
    %c0_i32 = arith.constant 0 : i32
    %c0_i32_0 = arith.constant 0 : i32
    return %arg0, %c0_i32 : i32, i32
  }
}

</mosaic_0001>

<llo_original>
// kernel: tpu_custom_call.1
$region0: #{tpu_custom_call.1}
  #allocation0 [shape = 'u32[]', space=smem, size = 0x4, offset = 0x4, fixed_abs, tag = 'smem constant byte address 0x4 - core index']
  #allocation1 [shape = 'u32[144,128]{1,0:T(1,128)}', space=vmem, size = 0x12000, scoped, tag = 'internal scratch']
  %s0 = inlined_call_operand.hbm [shape: f32[16,512], index: 0, kind: input, shape index: {}]
  %s1 = inlined_call_operand.hbm [shape: bf16[512,256], index: 1, kind: input, shape index: {}]
  %s2 = inlined_call_operand.vmem [shape: f32[1,256], index: 2, kind: input, shape index: {}]
  %s3 = inlined_call_operand.hbm [shape: bf16[256,128], index: 3, kind: input, shape index: {}]
  %s4 = inlined_call_operand.vmem [shape: f32[1,128], index: 4, kind: input, shape index: {}]
  %s5 = inlined_call_operand.hbm [shape: bf16[128,512], index: 5, kind: input, shape index: {}]
  %s6 = inlined_call_operand.vmem [shape: f32[1,512], index: 6, kind: input, shape index: {}]
  %s7 = inlined_call_operand.hbm [shape: f32[16,512], index: 7, kind: output, shape index: {}]
  %s8 = sld [smem:[#allocation0]]
  $region54: #{tpu_custom_call.1} parent=0
    _
  %s10 = ssub.s32 1, %s8
  %s11 = scalar_select 0, %s10, %s8
  $region1: #{tpu_custom_call.1} parent=0
    #allocation2 [shape = 'u8[32768]{0}', space=vmem, size = 0x8000, scoped, tag = 'input window, operand 0, single buffered']
    #allocation3 [shape = 's32[1]{0}', space=sflag, size = 0x4, scoped, tag = 'scoped memory for tpu_custom_call.1']
    #allocation4 [shape = 's32[1]{0}', space=sflag, size = 0x4, scoped, tag = 'scoped memory for tpu_custom_call.1']
    #allocation5 [shape = 'u8[262144]{0}', space=vmem, size = 0x40000, scoped, tag = 'input window, operand 1, single buffered']
    #allocation6 [shape = 's32[1]{0}', space=sflag, size = 0x4, scoped, tag = 'scoped memory for tpu_custom_call.1']
    #allocation7 [shape = 'u8[65536]{0}', space=vmem, size = 0x10000, scoped, tag = 'input window, operand 3, single buffered']
    #allocation8 [shape = 'u8[131072]{0}', space=vmem, size = 0x20000, scoped, tag = 'input window, operand 5, single buffered']
    #allocation9 [shape = 's32[1]{0}', space=sflag, size = 0x4, scoped, tag = 'scoped memory for tpu_custom_call.1']
    #allocation10 [shape = 'u8[32768]{0}', space=vmem, size = 0x8000, scoped, tag = 'output window, operand 0, single buffered']
    %12 = vsyncpa [#allocation3], 0
    %13 = vsyncpa [#allocation6], 0
    %14 = vsyncpa [#allocation9], 0
    %15 = vsyncpa [#allocation4], 0
    // Predicated region
    $region2: #{tpu_custom_call.1} parent=1 // pred_check
      _
    $region3: #{tpu_custom_call.1} parent=1 // pred_check_branch
      %17 = sbr.rel (0) target = $region5
    $region4: #{tpu_custom_call.1} parent=1 // pred_region
      %s19 = ssub.s32 1024, 1024
      %20 = vsyncadd [#allocation3], %s19
      %s21 = sshll.u32 [#allocation2], 4
      %s22 = int_to_ptr.vmem [resolvable:$true] %s21
      %27 = dma.hbm_to_vmem [thread:$0]  %s0, 1024, %s22, [#allocation3], 512, 512, 32
    $region5: #{tpu_custom_call.1} parent=1 // pred_fallthru
      _
    // Predicated region
    $region6: #{tpu_custom_call.1} parent=1 // pred_check
      _
    $region7: #{tpu_custom_call.1} parent=1 // pred_check_branch
      %29 = sbr.rel (0) target = $region9
    $region8: #{tpu_custom_call.1} parent=1 // pred_region
      %s31 = ssub.s32 8192, 8192
      %32 = vsyncadd [#allocation6], %s31
      %s33 = sshll.u32 [#allocation5], 4
      %s34 = int_to_ptr.vmem [resolvable:$true] %s33
      %39 = dma.hbm_to_vmem [thread:$0]  %s1, 8192, %s34, [#allocation6], 128, 128, 8
    $region9: #{tpu_custom_call.1} parent=1 // pred_fallthru
      _
    // Predicated region
    $region10: #{tpu_custom_call.1} parent=1 // pred_check
      _
    $region11: #{tpu_custom_call.1} parent=1 // pred_check_branch
      %41 = sbr.rel (0) target = $region13
    $region12: #{tpu_custom_call.1} parent=1 // pred_region
      _
    $region13: #{tpu_custom_call.1} parent=1 // pred_fallthru
      _
    // Predicated region
    $region14: #{tpu_custom_call.1} parent=1 // pred_check
      _
    $region15: #{tpu_custom_call.1} parent=1 // pred_check_branch
      %43 = sbr.rel (0) target = $region17
    $region16: #{tpu_custom_call.1} parent=1 // pred_region
      %s45 = ssub.s32 2048, 2048
      %46 = vsyncadd [#allocation6], %s45
      %s47 = sshll.u32 [#allocation7], 4
      %s48 = int_to_ptr.vmem [resolvable:$true] %s47
      %53 = dma.hbm_to_vmem [thread:$0]  %s3, 2048, %s48, [#allocation6], 64, 64, 4
    $region17: #{tpu_custom_call.1} parent=1 // pred_fallthru
      _
    // Predicated region
    $region18: #{tpu_custom_call.1} parent=1 // pred_check
      _
    $region19: #{tpu_custom_call.1} parent=1 // pred_check_branch
      %55 = sbr.rel (0) target = $region21
    $region20: #{tpu_custom_call.1} parent=1 // pred_region
      _
    $region21: #{tpu_custom_call.1} parent=1 // pred_fallthru
      _
    // Predicated region
    $region22: #{tpu_custom_call.1} parent=1 // pred_check
      _
    $region23: #{tpu_custom_call.1} parent=1 // pred_check_branch
      %57 = sbr.rel (0) target = $region25
    $region24: #{tpu_custom_call.1} parent=1 // pred_region
      %s59 = ssub.s32 4096, 4096
      %60 = vsyncadd [#allocation9], %s59
      %s61 = sshll.u32 [#allocation8], 4
      %s62 = int_to_ptr.vmem [resolvable:$true] %s61
      %67 = dma.hbm_to_vmem [thread:$0]  %s5, 4096, %s62, [#allocation9], 256, 256, 16
    $region25: #{tpu_custom_call.1} parent=1 // pred_fallthru
      _
    // Predicated region
    $region26: #{tpu_custom_call.1} parent=1 // pred_check
      _
    $region27: #{tpu_custom_call.1} parent=1 // pred_check_branch
      %69 = sbr.rel (0) target = $region29
    $region28: #{tpu_custom_call.1} parent=1 // pred_region
      _
    $region29: #{tpu_custom_call.1} parent=1 // pred_fallthru
      _
    // Predicated region
    $region30: #{tpu_custom_call.1} parent=1 // pred_check
      _
    $region31: #{tpu_custom_call.1} parent=1 // pred_check_branch
      %71 = sbr.rel (0) target = $region33
    $region32: #{tpu_custom_call.1} parent=1 // pred_region
      %72 = dma.done [#allocation3], 1024
    $region33: #{tpu_custom_call.1} parent=1 // pred_fallthru
      _
    // Predicated region
    $region34: #{tpu_custom_call.1} parent=1 // pred_check
      _
    $region35: #{tpu_custom_call.1} parent=1 // pred_check_branch
      %74 = sbr.rel (0) target = $region37
    $region36: #{tpu_custom_call.1} parent=1 // pred_region
      %75 = dma.done [#allocation6], 8192
    $region37: #{tpu_custom_call.1} parent=1 // pred_fallthru
      _
    // Predicated region
    $region38: #{tpu_custom_call.1} parent=1 // pred_check
      _
    $region39: #{tpu_custom_call.1} parent=1 // pred_check_branch
      %77 = sbr.rel (0) target = $region41
    $region40: #{tpu_custom_call.1} parent=1 // pred_region
      %78 = dma.done [#allocation6], 2048
    $region41: #{tpu_custom_call.1} parent=1 // pred_fallthru
      _
    // Predicated region
    $region42: #{tpu_custom_call.1} parent=1 // pred_check
      _
    $region43: #{tpu_custom_call.1} parent=1 // pred_check_branch
      %80 = sbr.rel (0) target = $region45
    $region44: #{tpu_custom_call.1} parent=1 // pred_region
      %81 = dma.done [#allocation9], 4096
    $region45: #{tpu_custom_call.1} parent=1 // pred_fallthru
      _
    %v83 = vld [vmem:[#allocation2] sm:$0xff]
    %v84 = vld [vmem:[#allocation2 + $0x8] sm:$0xff]
    %v85 = vld [vmem:[#allocation2 + $0x10] sm:$0xff]
    %v86 = vld [vmem:[#allocation2 + $0x18] sm:$0xff]
    %v87 = vld [vmem:[#allocation2 + $0x20] sm:$0xff]
    %v88 = vld [vmem:[#allocation2 + $0x28] sm:$0xff]
    %v89 = vld [vmem:[#allocation2 + $0x30] sm:$0xff]
    %v90 = vld [vmem:[#allocation2 + $0x38] sm:$0xff]
    %v91 = vld [vmem:[#allocation5] sm:$0xff]
    %v92 = vld [vmem:[#allocation5 + $0x8] sm:$0xff]
    %v93 = vld [vmem:[#allocation5 + $0x10] sm:$0xff]
    %v94 = vld [vmem:[#allocation5 + $0x18] sm:$0xff]
    %v95 = vld [vmem:[#allocation5 + $0x20] sm:$0xff]
    %v96 = vld [vmem:[#allocation5 + $0x28] sm:$0xff]
    %v97 = vld [vmem:[#allocation5 + $0x30] sm:$0xff]
    %v98 = vld [vmem:[#allocation5 + $0x38] sm:$0xff]
    %v99 = vld [vmem:[#allocation5 + $0x40] sm:$0xff]
    %v100 = vld [vmem:[#allocation5 + $0x48] sm:$0xff]
    %v101 = vld [vmem:[#allocation5 + $0x50] sm:$0xff]
    %v102 = vld [vmem:[#allocation5 + $0x58] sm:$0xff]
    %v103 = vld [vmem:[#allocation5 + $0x60] sm:$0xff]
    %v104 = vld [vmem:[#allocation5 + $0x68] sm:$0xff]
    %v105 = vld [vmem:[#allocation5 + $0x70] sm:$0xff]
    %v106 = vld [vmem:[#allocation5 + $0x78] sm:$0xff]
    %v107 = vld [vmem:[#allocation5 + $0x80] sm:$0xff]
    %v108 = vld [vmem:[#allocation5 + $0x88] sm:$0xff]
    %v109 = vld [vmem:[#allocation5 + $0x90] sm:$0xff]
    %v110 = vld [vmem:[#allocation5 + $0x98] sm:$0xff]
    %v111 = vld [vmem:[#allocation5 + $0xa0] sm:$0xff]
    %v112 = vld [vmem:[#allocation5 + $0xa8] sm:$0xff]
    %v113 = vld [vmem:[#allocation5 + $0xb0] sm:$0xff]
    %v114 = vld [vmem:[#allocation5 + $0xb8] sm:$0xff]
    %v115 = vld [vmem:[#allocation5 + $0xc0] sm:$0xff]
    %v116 = vld [vmem:[#allocation5 + $0xc8] sm:$0xff]
    %v117 = vld [vmem:[#allocation5 + $0xd0] sm:$0xff]
    %v118 = vld [vmem:[#allocation5 + $0xd8] sm:$0xff]
    %v119 = vld [vmem:[#allocation5 + $0xe0] sm:$0xff]
    %v120 = vld [vmem:[#allocation5 + $0xe8] sm:$0xff]
    %v121 = vld [vmem:[#allocation5 + $0xf0] sm:$0xff]
    %v122 = vld [vmem:[#allocation5 + $0xf8] sm:$0xff]
    %v123 = vld [vmem:[#allocation5 + $0x100] sm:$0xff]
    %v124 = vld [vmem:[#allocation5 + $0x108] sm:$0xff]
    %v125 = vld [vmem:[#allocation5 + $0x110] sm:$0xff]
    %v126 = vld [vmem:[#allocation5 + $0x118] sm:$0xff]
    %v127 = vld [vmem:[#allocation5 + $0x120] sm:$0xff]
    %v128 = vld [vmem:[#allocation5 + $0x128] sm:$0xff]
    %v129 = vld [vmem:[#allocation5 + $0x130] sm:$0xff]
    %v130 = vld [vmem:[#allocation5 + $0x138] sm:$0xff]
    %v131 = vld [vmem:[#allocation5 + $0x140] sm:$0xff]
    %v132 = vld [vmem:[#allocation5 + $0x148] sm:$0xff]
    %v133 = vld [vmem:[#allocation5 + $0x150] sm:$0xff]
    %v134 = vld [vmem:[#allocation5 + $0x158] sm:$0xff]
    %v135 = vld [vmem:[#allocation5 + $0x160] sm:$0xff]
    %v136 = vld [vmem:[#allocation5 + $0x168] sm:$0xff]
    %v137 = vld [vmem:[#allocation5 + $0x170] sm:$0xff]
    %v138 = vld [vmem:[#allocation5 + $0x178] sm:$0xff]
    %v139 = vld [vmem:[#allocation5 + $0x180] sm:$0xff]
    %v140 = vld [vmem:[#allocation5 + $0x188] sm:$0xff]
    %v141 = vld [vmem:[#allocation5 + $0x190] sm:$0xff]
    %v142 = vld [vmem:[#allocation5 + $0x198] sm:$0xff]
    %v143 = vld [vmem:[#allocation5 + $0x1a0] sm:$0xff]
    %v144 = vld [vmem:[#allocation5 + $0x1a8] sm:$0xff]
    %v145 = vld [vmem:[#allocation5 + $0x1b0] sm:$0xff]
    %v146 = vld [vmem:[#allocation5 + $0x1b8] sm:$0xff]
    %v147 = vld [vmem:[#allocation5 + $0x1c0] sm:$0xff]
    %v148 = vld [vmem:[#allocation5 + $0x1c8] sm:$0xff]
    %v149 = vld [vmem:[#allocation5 + $0x1d0] sm:$0xff]
    %v150 = vld [vmem:[#allocation5 + $0x1d8] sm:$0xff]
    %v151 = vld [vmem:[#allocation5 + $0x1e0] sm:$0xff]
    %v152 = vld [vmem:[#allocation5 + $0x1e8] sm:$0xff]
    %v153 = vld [vmem:[#allocation5 + $0x1f0] sm:$0xff]
    %v154 = vld [vmem:[#allocation5 + $0x1f8] sm:$0xff]
    %v155 = vld [vmem:[%s2] sm:$0x3]
    %v156 = vpack.c.bf16 %v87, %v83
    %v157 = vpack.c.bf16 %v88, %v84
    %v158 = vpack.c.bf16 %v89, %v85
    %v159 = vpack.c.bf16 %v90, %v86
    %v161 = vlaneseq
    %v162 = vshrl.u32 %v161, 7
    %v163 = vsub.s32 0, %v162
    %v164 = vrot.slane %v155, %v163
    %v165 = vlaneseq
    %v166 = vshrl.u32 %v165, 7
    %v167 = vsub.s32 1, %v166
    %v168 = vrot.slane %v155, %v167
    %v235 = vunpack.c.l.b16 %v91
    %v236 = vunpack.c.h.b16 %v91
    %v237 = vunpack.c.l.b16 %v92
    %v238 = vunpack.c.h.b16 %v92
    %v239 = vunpack.c.l.b16 %v93
    %v240 = vunpack.c.h.b16 %v93
    %v241 = vunpack.c.l.b16 %v94
    %v242 = vunpack.c.h.b16 %v94
    %v243 = vunpack.c.l.b16 %v95
    %v244 = vunpack.c.h.b16 %v95
    %v245 = vunpack.c.l.b16 %v96
    %v246 = vunpack.c.h.b16 %v96
    %v247 = vunpack.c.l.b16 %v97
    %v248 = vunpack.c.h.b16 %v97
    %v249 = vunpack.c.l.b16 %v98
    %v250 = vunpack.c.h.b16 %v98
    %v251 = vunpack.c.l.b16 %v99
    %v252 = vunpack.c.h.b16 %v99
    %v253 = vunpack.c.l.b16 %v100
    %v254 = vunpack.c.h.b16 %v100
    %v255 = vunpack.c.l.b16 %v101
    %v256 = vunpack.c.h.b16 %v101
    %v257 = vunpack.c.l.b16 %v102
    %v258 = vunpack.c.h.b16 %v102
    %v259 = vunpack.c.l.b16 %v103
    %v260 = vunpack.c.h.b16 %v103
    %v261 = vunpack.c.l.b16 %v104
    %v262 = vunpack.c.h.b16 %v104
    %v263 = vunpack.c.l.b16 %v105
    %v264 = vunpack.c.h.b16 %v105
    %v265 = vunpack.c.l.b16 %v106
    %v266 = vunpack.c.h.b16 %v106
    %v267 = vunpack.c.l.b16 %v107
    %v268 = vunpack.c.h.b16 %v107
    %v269 = vunpack.c.l.b16 %v108
    %v270 = vunpack.c.h.b16 %v108
    %v271 = vunpack.c.l.b16 %v109
    %v272 = vunpack.c.h.b16 %v109
    %v273 = vunpack.c.l.b16 %v110
    %v274 = vunpack.c.h.b16 %v110
    %v275 = vunpack.c.l.b16 %v111
    %v276 = vunpack.c.h.b16 %v111
    %v277 = vunpack.c.l.b16 %v112
    %v278 = vunpack.c.h.b16 %v112
    %v279 = vunpack.c.l.b16 %v113
    %v280 = vunpack.c.h.b16 %v113
    %v281 = vunpack.c.l.b16 %v114
    %v282 = vunpack.c.h.b16 %v114
    %v283 = vunpack.c.l.b16 %v115
    %v284 = vunpack.c.h.b16 %v115
    %v285 = vunpack.c.l.b16 %v116
    %v286 = vunpack.c.h.b16 %v116
    %v287 = vunpack.c.l.b16 %v117
    %v288 = vunpack.c.h.b16 %v117
    %v289 = vunpack.c.l.b16 %v118
    %v290 = vunpack.c.h.b16 %v118
    %v291 = vunpack.c.l.b16 %v119
    %v292 = vunpack.c.h.b16 %v119
    %v293 = vunpack.c.l.b16 %v120
    %v294 = vunpack.c.h.b16 %v120
    %v295 = vunpack.c.l.b16 %v121
    %v296 = vunpack.c.h.b16 %v121
    %v297 = vunpack.c.l.b16 %v122
    %v298 = vunpack.c.h.b16 %v122
    %v299 = vunpack.c.l.b16 %v123
    %v300 = vunpack.c.h.b16 %v123
    %v301 = vunpack.c.l.b16 %v124
    %v302 = vunpack.c.h.b16 %v124
    %v303 = vunpack.c.l.b16 %v125
    %v304 = vunpack.c.h.b16 %v125
    %v305 = vunpack.c.l.b16 %v126
    %v306 = vunpack.c.h.b16 %v126
    %v307 = vunpack.c.l.b16 %v127
    %v308 = vunpack.c.h.b16 %v127
    %v309 = vunpack.c.l.b16 %v128
    %v310 = vunpack.c.h.b16 %v128
    %v311 = vunpack.c.l.b16 %v129
    %v312 = vunpack.c.h.b16 %v129
    %v313 = vunpack.c.l.b16 %v130
    %v314 = vunpack.c.h.b16 %v130
    %v315 = vunpack.c.l.b16 %v131
    %v316 = vunpack.c.h.b16 %v131
    %v317 = vunpack.c.l.b16 %v132
    %v318 = vunpack.c.h.b16 %v132
    %v319 = vunpack.c.l.b16 %v133
    %v320 = vunpack.c.h.b16 %v133
    %v321 = vunpack.c.l.b16 %v134
    %v322 = vunpack.c.h.b16 %v134
    %v323 = vunpack.c.l.b16 %v135
    %v324 = vunpack.c.h.b16 %v135
    %v325 = vunpack.c.l.b16 %v136
    %v326 = vunpack.c.h.b16 %v136
    %v327 = vunpack.c.l.b16 %v137
    %v328 = vunpack.c.h.b16 %v137
    %v329 = vunpack.c.l.b16 %v138
    %v330 = vunpack.c.h.b16 %v138
    %v331 = vunpack.c.l.b16 %v139
    %v332 = vunpack.c.h.b16 %v139
    %v333 = vunpack.c.l.b16 %v140
    %v334 = vunpack.c.h.b16 %v140
    %v335 = vunpack.c.l.b16 %v141
    %v336 = vunpack.c.h.b16 %v141
    %v337 = vunpack.c.l.b16 %v142
    %v338 = vunpack.c.h.b16 %v142
    %v339 = vunpack.c.l.b16 %v143
    %v340 = vunpack.c.h.b16 %v143
    %v341 = vunpack.c.l.b16 %v144
    %v342 = vunpack.c.h.b16 %v144
    %v343 = vunpack.c.l.b16 %v145
    %v344 = vunpack.c.h.b16 %v145
    %v345 = vunpack.c.l.b16 %v146
    %v346 = vunpack.c.h.b16 %v146
    %v347 = vunpack.c.l.b16 %v147
    %v348 = vunpack.c.h.b16 %v147
    %v349 = vunpack.c.l.b16 %v148
    %v350 = vunpack.c.h.b16 %v148
    %v351 = vunpack.c.l.b16 %v149
    %v352 = vunpack.c.h.b16 %v149
    %v353 = vunpack.c.l.b16 %v150
    %v354 = vunpack.c.h.b16 %v150
    %v355 = vunpack.c.l.b16 %v151
    %v356 = vunpack.c.h.b16 %v151
    %v357 = vunpack.c.l.b16 %v152
    %v358 = vunpack.c.h.b16 %v152
    %v359 = vunpack.c.l.b16 %v153
    %v360 = vunpack.c.h.b16 %v153
    %v361 = vunpack.c.l.b16 %v154
    %v362 = vunpack.c.h.b16 %v154
    %v363 = vpack.c.b16 %v237, %v235
    %v364 = vpack.c.b16 %v238, %v236
    %v365 = vpack.c.b16 %v241, %v239
    %v366 = vpack.c.b16 %v242, %v240
    %v367 = vpack.c.b16 %v245, %v243
    %v368 = vpack.c.b16 %v246, %v244
    %v369 = vpack.c.b16 %v249, %v247
    %v370 = vpack.c.b16 %v250, %v248
    %v371 = vpack.c.b16 %v253, %v251
    %v372 = vpack.c.b16 %v254, %v252
    %v373 = vpack.c.b16 %v257, %v255
    %v374 = vpack.c.b16 %v258, %v256
    %v375 = vpack.c.b16 %v261, %v259
    %v376 = vpack.c.b16 %v262, %v260
    %v377 = vpack.c.b16 %v265, %v263
    %v378 = vpack.c.b16 %v266, %v264
    %v379 = vpack.c.b16 %v269, %v267
    %v380 = vpack.c.b16 %v270, %v268
    %v381 = vpack.c.b16 %v273, %v271
    %v382 = vpack.c.b16 %v274, %v272
    %v383 = vpack.c.b16 %v277, %v275
    %v384 = vpack.c.b16 %v278, %v276
    %v385 = vpack.c.b16 %v281, %v279
    %v386 = vpack.c.b16 %v282, %v280
    %v387 = vpack.c.b16 %v285, %v283
    %v388 = vpack.c.b16 %v286, %v284
    %v389 = vpack.c.b16 %v289, %v287
    %v390 = vpack.c.b16 %v290, %v288
    %v391 = vpack.c.b16 %v293, %v291
    %v392 = vpack.c.b16 %v294, %v292
    %v393 = vpack.c.b16 %v297, %v295
    %v394 = vpack.c.b16 %v298, %v296
    %v395 = vpack.c.b16 %v301, %v299
    %v396 = vpack.c.b16 %v302, %v300
    %v397 = vpack.c.b16 %v305, %v303
    %v398 = vpack.c.b16 %v306, %v304
    %v399 = vpack.c.b16 %v309, %v307
    %v400 = vpack.c.b16 %v310, %v308
    %v401 = vpack.c.b16 %v313, %v311
    %v402 = vpack.c.b16 %v314, %v312
    %v403 = vpack.c.b16 %v317, %v315
    %v404 = vpack.c.b16 %v318, %v316
    %v405 = vpack.c.b16 %v321, %v319
    %v406 = vpack.c.b16 %v322, %v320
    %v407 = vpack.c.b16 %v325, %v323
    %v408 = vpack.c.b16 %v326, %v324
    %v409 = vpack.c.b16 %v329, %v327
    %v410 = vpack.c.b16 %v330, %v328
    %v411 = vpack.c.b16 %v333, %v331
    %v412 = vpack.c.b16 %v334, %v332
    %v413 = vpack.c.b16 %v337, %v335
    %v414 = vpack.c.b16 %v338, %v336
    %v415 = vpack.c.b16 %v341, %v339
    %v416 = vpack.c.b16 %v342, %v340
    %v417 = vpack.c.b16 %v345, %v343
    %v418 = vpack.c.b16 %v346, %v344
    %v419 = vpack.c.b16 %v349, %v347
    %v420 = vpack.c.b16 %v350, %v348
    %v421 = vpack.c.b16 %v353, %v351
    %v422 = vpack.c.b16 %v354, %v352
    %v423 = vpack.c.b16 %v357, %v355
    %v424 = vpack.c.b16 %v358, %v356
    %v425 = vpack.c.b16 %v361, %v359
    %v426 = vpack.c.b16 %v362, %v360
    %491 = vmatprep.subr.bf16.mxu0 %v364
    %492 = vmatpush1.bf16.msra.mxu0 %v363
    %493 = vmatprep.subr.bf16.mxu0 %v366
    %494 = vmatpush1.bf16.msra.mxu0 %v365
    %495 = vmatprep.subr.bf16.mxu0 %v368
    %496 = vmatpush1.bf16.msra.mxu0 %v367
    %497 = vmatprep.subr.bf16.mxu0 %v370
    %498 = vmatpush1.bf16.msra.mxu0 %v369
    %499 = vmatprep.subr.bf16.mxu0 %v372
    %500 = vmatpush1.bf16.msra.mxu0 %v371
    %501 = vmatprep.subr.bf16.mxu0 %v374
    %502 = vmatpush1.bf16.msra.mxu0 %v373
    %503 = vmatprep.subr.bf16.mxu0 %v376
    %504 = vmatpush1.bf16.msra.mxu0 %v375
    %505 = vmatprep.subr.bf16.mxu0 %v378
    %506 = vmatpush1.bf16.msra.mxu0 %v377
    %507 = vmatprep.subr.bf16.mxu0 %v380
    %508 = vmatpush1.bf16.msra.mxu0 %v379
    %509 = vmatprep.subr.bf16.mxu0 %v382
    %510 = vmatpush1.bf16.msra.mxu0 %v381
    %511 = vmatprep.subr.bf16.mxu0 %v384
    %512 = vmatpush1.bf16.msra.mxu0 %v383
    %513 = vmatprep.subr.bf16.mxu0 %v386
    %514 = vmatpush1.bf16.msra.mxu0 %v385
    %515 = vmatprep.subr.bf16.mxu0 %v388
    %516 = vmatpush1.bf16.msra.mxu0 %v387
    %517 = vmatprep.subr.bf16.mxu0 %v390
    %518 = vmatpush1.bf16.msra.mxu0 %v389
    %519 = vmatprep.subr.bf16.mxu0 %v392
    %520 = vmatpush1.bf16.msra.mxu0 %v391
    %521 = vmatprep.subr.bf16.mxu0 %v394
    %522 = vmatpush1.bf16.msra.mxu0 %v393
    %523 = vmatprep.mubr.bf16.mxu0 %v157
    %524 = vmatmul.mubr.bf16.gmra.mrb[0].mxu0 %v156
    %v525 = vpop.f32.mrb[0].mxu0
    %v526 = vadd.f32 %v164, %v525
    %v527 = vpop.f32.mrb[0].mxu0
    %v528 = vadd.f32 %v168, %v527
    %v529 = vpop.f32.mrb[0].mxu0
    %v530 = vadd.f32 %v164, %v529
    %v531 = vpop.f32.mrb[0].mxu0
    %v532 = vadd.f32 %v168, %v531
    %533 = vdwg.mxu0
    %534 = vmatprep.subr.bf16.mxu0 %v396
    %535 = vmatpush1.bf16.msra.mxu0 %v395
    %536 = vmatprep.subr.bf16.mxu0 %v398
    %537 = vmatpush1.bf16.msra.mxu0 %v397
    %538 = vmatprep.subr.bf16.mxu0 %v400
    %539 = vmatpush1.bf16.msra.mxu0 %v399
    %540 = vmatprep.subr.bf16.mxu0 %v402
    %541 = vmatpush1.bf16.msra.mxu0 %v401
    %542 = vmatprep.subr.bf16.mxu0 %v404
    %543 = vmatpush1.bf16.msra.mxu0 %v403
    %544 = vmatprep.subr.bf16.mxu0 %v406
    %545 = vmatpush1.bf16.msra.mxu0 %v405
    %546 = vmatprep.subr.bf16.mxu0 %v408
    %547 = vmatpush1.bf16.msra.mxu0 %v407
    %548 = vmatprep.subr.bf16.mxu0 %v410
    %549 = vmatpush1.bf16.msra.mxu0 %v409
    %550 = vmatprep.subr.bf16.mxu0 %v412
    %551 = vmatpush1.bf16.msra.mxu0 %v411
    %552 = vmatprep.subr.bf16.mxu0 %v414
    %553 = vmatpush1.bf16.msra.mxu0 %v413
    %554 = vmatprep.subr.bf16.mxu0 %v416
    %555 = vmatpush1.bf16.msra.mxu0 %v415
    %556 = vmatprep.subr.bf16.mxu0 %v418
    %557 = vmatpush1.bf16.msra.mxu0 %v417
    %558 = vmatprep.subr.bf16.mxu0 %v420
    %559 = vmatpush1.bf16.msra.mxu0 %v419
    %560 = vmatprep.subr.bf16.mxu0 %v422
    %561 = vmatpush1.bf16.msra.mxu0 %v421
    %562 = vmatprep.subr.bf16.mxu0 %v424
    %563 = vmatpush1.bf16.msra.mxu0 %v423
    %564 = vmatprep.subr.bf16.mxu0 %v426
    %565 = vmatpush1.bf16.msra.mxu0 %v425
    %566 = vmatprep.mubr.bf16.mxu0 %v159
    %567 = vmatmul.mubr.bf16.gmra.mrb[0].mxu0 %v158
    %v568 = vpop.f32.mrb[0].mxu0
    %v569 = vadd.f32 %v526, %v568
    %v570 = vpop.f32.mrb[0].mxu0
    %v571 = vadd.f32 %v528, %v570
    %v572 = vpop.f32.mrb[0].mxu0
    %v573 = vadd.f32 %v530, %v572
    %v574 = vpop.f32.mrb[0].mxu0
    %v575 = vadd.f32 %v532, %v574
    %576 = vdwg.mxu0
    %vm577 = vcmp.gt.f32.partialorder %v569, 0.0
    %vm578 = vcmp.gt.f32.partialorder %v571, 0.0
    %vm579 = vcmp.gt.f32.partialorder %v573, 0.0
    %vm580 = vcmp.gt.f32.partialorder %v575, 0.0
    %v581 = vmul.f32 %v569, 1.442695
    %v582 = vpow.pop %v581
    %v583 = vmul.f32 %v571, 1.442695
    %v584 = vpow.pop %v583
    %v585 = vmul.f32 %v573, 1.442695
    %v586 = vpow.pop %v585
    %v587 = vmul.f32 %v575, 1.442695
    %v588 = vpow.pop %v587
    %v589 = vsub.f32 %v582, 1.0
    %v590 = vsub.f32 %v584, 1.0
    %v591 = vsub.f32 %v586, 1.0
    %v592 = vsub.f32 %v588, 1.0
    %v593 = vmul.f32 %v589, 1.6732632
    %v594 = vmul.f32 %v590, 1.6732632
    %v595 = vmul.f32 %v591, 1.6732632
    %v596 = vmul.f32 %v592, 1.6732632
    %v597 = vsel %vm577, %v569, %v593
    %v598 = vsel %vm578, %v571, %v594
    %v599 = vsel %vm579, %v573, %v595
    %v600 = vsel %vm580, %v575, %v596
    %v601 = vmul.f32 %v597, 1.050701
    %v602 = vmul.f32 %v598, 1.050701
    %v603 = vmul.f32 %v599, 1.050701
    %v604 = vmul.f32 %v600, 1.050701
    %v605 = vld [vmem:[#allocation7] sm:$0xf]
    %v606 = vld [vmem:[#allocation7 + $0x4] sm:$0xf]
    %v607 = vld [vmem:[#allocation7 + $0x8] sm:$0xf]
    %v608 = vld [vmem:[#allocation7 + $0xc] sm:$0xf]
    %v609 = vld [vmem:[#allocation7 + $0x10] sm:$0xf]
    %v610 = vld [vmem:[#allocation7 + $0x14] sm:$0xf]
    %v611 = vld [vmem:[#allocation7 + $0x18] sm:$0xf]
    %v612 = vld [vmem:[#allocation7 + $0x1c] sm:$0xf]
    %v613 = vld [vmem:[#allocation7 + $0x20] sm:$0xf]
    %v614 = vld [vmem:[#allocation7 + $0x24] sm:$0xf]
    %v615 = vld [vmem:[#allocation7 + $0x28] sm:$0xf]
    %v616 = vld [vmem:[#allocation7 + $0x2c] sm:$0xf]
    %v617 = vld [vmem:[#allocation7 + $0x30] sm:$0xf]
    %v618 = vld [vmem:[#allocation7 + $0x34] sm:$0xf]
    %v619 = vld [vmem:[#allocation7 + $0x38] sm:$0xf]
    %v620 = vld [vmem:[#allocation7 + $0x3c] sm:$0xf]
    %v621 = vld [vmem:[#allocation7 + $0x40] sm:$0xf]
    %v622 = vld [vmem:[#allocation7 + $0x44] sm:$0xf]
    %v623 = vld [vmem:[#allocation7 + $0x48] sm:$0xf]
    %v624 = vld [vmem:[#allocation7 + $0x4c] sm:$0xf]
    %v625 = vld [vmem:[#allocation7 + $0x50] sm:$0xf]
    %v626 = vld [vmem:[#allocation7 + $0x54] sm:$0xf]
    %v627 = vld [vmem:[#allocation7 + $0x58] sm:$0xf]
    %v628 = vld [vmem:[#allocation7 + $0x5c] sm:$0xf]
    %v629 = vld [vmem:[#allocation7 + $0x60] sm:$0xf]
    %v630 = vld [vmem:[#allocation7 + $0x64] sm:$0xf]
    %v631 = vld [vmem:[#allocation7 + $0x68] sm:$0xf]
    %v632 = vld [vmem:[#allocation7 + $0x6c] sm:$0xf]
    %v633 = vld [vmem:[#allocation7 + $0x70] sm:$0xf]
    %v634 = vld [vmem:[#allocation7 + $0x74] sm:$0xf]
    %v635 = vld [vmem:[#allocation7 + $0x78] sm:$0xf]
    %v636 = vld [vmem:[#allocation7 + $0x7c] sm:$0xf]
    %v637 = vld [vmem:[%s4] sm:$0x1]
    %v638 = vpack.c.bf16 %v603, %v601
    %v639 = vpack.c.bf16 %v604, %v602
    %v641 = vlaneseq
    %v642 = vshrl.u32 %v641, 7
    %v643 = vsub.s32 0, %v642
    %v644 = vrot.slane %v637, %v643
    %v678 = vunpack.c.l.b16 %v605
    %v679 = vunpack.c.l.b16 %v606
    %v680 = vunpack.c.l.b16 %v607
    %v681 = vunpack.c.l.b16 %v608
    %v682 = vunpack.c.l.b16 %v609
    %v683 = vunpack.c.l.b16 %v610
    %v684 = vunpack.c.l.b16 %v611
    %v685 = vunpack.c.l.b16 %v612
    %v686 = vunpack.c.l.b16 %v613
    %v687 = vunpack.c.l.b16 %v614
    %v688 = vunpack.c.l.b16 %v615
    %v689 = vunpack.c.l.b16 %v616
    %v690 = vunpack.c.l.b16 %v617
    %v691 = vunpack.c.l.b16 %v618
    %v692 = vunpack.c.l.b16 %v619
    %v693 = vunpack.c.l.b16 %v620
    %v694 = vunpack.c.l.b16 %v621
    %v695 = vunpack.c.l.b16 %v622
    %v696 = vunpack.c.l.b16 %v623
    %v697 = vunpack.c.l.b16 %v624
    %v698 = vunpack.c.l.b16 %v625
    %v699 = vunpack.c.l.b16 %v626
    %v700 = vunpack.c.l.b16 %v627
    %v701 = vunpack.c.l.b16 %v628
    %v702 = vunpack.c.l.b16 %v629
    %v703 = vunpack.c.l.b16 %v630
    %v704 = vunpack.c.l.b16 %v631
    %v705 = vunpack.c.l.b16 %v632
    %v706 = vunpack.c.l.b16 %v633
    %v707 = vunpack.c.l.b16 %v634
    %v708 = vunpack.c.l.b16 %v635
    %v709 = vunpack.c.l.b16 %v636
    %v710 = vpack.c.b16 %v679, %v678
    %v711 = vpack.c.b16 %v681, %v680
    %v712 = vpack.c.b16 %v683, %v682
    %v713 = vpack.c.b16 %v685, %v684
    %v714 = vpack.c.b16 %v687, %v686
    %v715 = vpack.c.b16 %v689, %v688
    %v716 = vpack.c.b16 %v691, %v690
    %v717 = vpack.c.b16 %v693, %v692
    %v718 = vpack.c.b16 %v695, %v694
    %v719 = vpack.c.b16 %v697, %v696
    %v720 = vpack.c.b16 %v699, %v698
    %v721 = vpack.c.b16 %v701, %v700
    %v722 = vpack.c.b16 %v703, %v702
    %v723 = vpack.c.b16 %v705, %v704
    %v724 = vpack.c.b16 %v707, %v706
    %v725 = vpack.c.b16 %v709, %v708
    %742 = vmatprep.subr.bf16.mxu0 0
    %743 = vmatpush1.bf16.msra.mxu0 %v710
    %744 = vmatprep.subr.bf16.mxu0 0
    %745 = vmatpush1.bf16.msra.mxu0 %v711
    %746 = vmatprep.subr.bf16.mxu0 0
    %747 = vmatpush1.bf16.msra.mxu0 %v712
    %748 = vmatprep.subr.bf16.mxu0 0
    %749 = vmatpush1.bf16.msra.mxu0 %v713
    %750 = vmatprep.subr.bf16.mxu0 0
    %751 = vmatpush1.bf16.msra.mxu0 %v714
    %752 = vmatprep.subr.bf16.mxu0 0
    %753 = vmatpush1.bf16.msra.mxu0 %v715
    %754 = vmatprep.subr.bf16.mxu0 0
    %755 = vmatpush1.bf16.msra.mxu0 %v716
    %756 = vmatprep.subr.bf16.mxu0 0
    %757 = vmatpush1.bf16.msra.mxu0 %v717
    %758 = vmatprep.subr.bf16.mxu0 0
    %759 = vmatpush1.bf16.msra.mxu0 %v718
    %760 = vmatprep.subr.bf16.mxu0 0
    %761 = vmatpush1.bf16.msra.mxu0 %v719
    %762 = vmatprep.subr.bf16.mxu0 0
    %763 = vmatpush1.bf16.msra.mxu0 %v720
    %764 = vmatprep.subr.bf16.mxu0 0
    %765 = vmatpush1.bf16.msra.mxu0 %v721
    %766 = vmatprep.subr.bf16.mxu0 0
    %767 = vmatpush1.bf16.msra.mxu0 %v722
    %768 = vmatprep.subr.bf16.mxu0 0
    %769 = vmatpush1.bf16.msra.mxu0 %v723
    %770 = vmatprep.subr.bf16.mxu0 0
    %771 = vmatpush1.bf16.msra.mxu0 %v724
    %772 = vmatprep.subr.bf16.mxu0 0
    %773 = vmatpush1.bf16.msra.mxu0 %v725
    %774 = vmatprep.mubr.bf16.mxu0 %v639
    %775 = vmatmul.mubr.bf16.gmra.mrb[0].mxu0 %v638
    %v776 = vpop.f32.mrb[0].mxu0
    %v777 = vadd.f32 %v644, %v776
    %v778 = vpop.f32.mrb[0].mxu0
    %v779 = vpop.f32.mrb[0].mxu0
    %v780 = vadd.f32 %v644, %v779
    %v781 = vpop.f32.mrb[0].mxu0
    %782 = vdwg.mxu0
    %vm783 = vcmp.gt.f32.partialorder %v777, 0.0
    %vm784 = vcmp.gt.f32.partialorder %v780, 0.0
    %v785 = vmul.f32 %v777, 1.442695
    %v786 = vpow.pop %v785
    %v787 = vmul.f32 %v780, 1.442695
    %v788 = vpow.pop %v787
    %v789 = vsub.f32 %v786, 1.0
    %v790 = vsub.f32 %v788, 1.0
    %v791 = vmul.f32 %v789, 1.6732632
    %v792 = vmul.f32 %v790, 1.6732632
    %v793 = vsel %vm783, %v777, %v791
    %v794 = vsel %vm784, %v780, %v792
    %v795 = vmul.f32 %v793, 1.050701
    %v796 = vmul.f32 %v794, 1.050701
    %v797 = vld [vmem:[#allocation8] sm:$0xff]
    %v798 = vld [vmem:[#allocation8 + $0x8] sm:$0xff]
    %v799 = vld [vmem:[#allocation8 + $0x10] sm:$0xff]
    %v800 = vld [vmem:[#allocation8 + $0x18] sm:$0xff]
    %v801 = vld [vmem:[#allocation8 + $0x20] sm:$0xff]
    %v802 = vld [vmem:[#allocation8 + $0x28] sm:$0xff]
    %v803 = vld [vmem:[#allocation8 + $0x30] sm:$0xff]
    %v804 = vld [vmem:[#allocation8 + $0x38] sm:$0xff]
    %v805 = vld [vmem:[#allocation8 + $0x40] sm:$0xff]
    %v806 = vld [vmem:[#allocation8 + $0x48] sm:$0xff]
    %v807 = vld [vmem:[#allocation8 + $0x50] sm:$0xff]
    %v808 = vld [vmem:[#allocation8 + $0x58] sm:$0xff]
    %v809 = vld [vmem:[#allocation8 + $0x60] sm:$0xff]
    %v810 = vld [vmem:[#allocation8 + $0x68] sm:$0xff]
    %v811 = vld [vmem:[#allocation8 + $0x70] sm:$0xff]
    %v812 = vld [vmem:[#allocation8 + $0x78] sm:$0xff]
    %v813 = vld [vmem:[#allocation8 + $0x80] sm:$0xff]
    %v814 = vld [vmem:[#allocation8 + $0x88] sm:$0xff]
    %v815 = vld [vmem:[#allocation8 + $0x90] sm:$0xff]
    %v816 = vld [vmem:[#allocation8 + $0x98] sm:$0xff]
    %v817 = vld [vmem:[#allocation8 + $0xa0] sm:$0xff]
    %v818 = vld [vmem:[#allocation8 + $0xa8] sm:$0xff]
    %v819 = vld [vmem:[#allocation8 + $0xb0] sm:$0xff]
    %v820 = vld [vmem:[#allocation8 + $0xb8] sm:$0xff]
    %v821 = vld [vmem:[#allocation8 + $0xc0] sm:$0xff]
    %v822 = vld [vmem:[#allocation8 + $0xc8] sm:$0xff]
    %v823 = vld [vmem:[#allocation8 + $0xd0] sm:$0xff]
    %v824 = vld [vmem:[#allocation8 + $0xd8] sm:$0xff]
    %v825 = vld [vmem:[#allocation8 + $0xe0] sm:$0xff]
    %v826 = vld [vmem:[#allocation8 + $0xe8] sm:$0xff]
    %v827 = vld [vmem:[#allocation8 + $0xf0] sm:$0xff]
    %v828 = vld [vmem:[#allocation8 + $0xf8] sm:$0xff]
    %v829 = vld [vmem:[%s6] sm:$0xf]
    %v830 = vpack.c.bf16 %v796, %v795
    %v832 = vlaneseq
    %v833 = vshrl.u32 %v832, 7
    %v834 = vsub.s32 0, %v833
    %v835 = vrot.slane %v829, %v834
    %v836 = vlaneseq
    %v837 = vshrl.u32 %v836, 7
    %v838 = vsub.s32 1, %v837
    %v839 = vrot.slane %v829, %v838
    %v840 = vlaneseq
    %v841 = vshrl.u32 %v840, 7
    %v842 = vsub.s32 2, %v841
    %v843 = vrot.slane %v829, %v842
    %v844 = vlaneseq
    %v845 = vshrl.u32 %v844, 7
    %v846 = vsub.s32 3, %v845
    %v847 = vrot.slane %v829, %v846
    %v884 = vunpack.c.l.b16 %v797
    %v885 = vunpack.c.h.b16 %v797
    %v886 = vunpack.c.l.b16 %v798
    %v887 = vunpack.c.h.b16 %v798
    %v888 = vunpack.c.l.b16 %v799
    %v889 = vunpack.c.h.b16 %v799
    %v890 = vunpack.c.l.b16 %v800
    %v891 = vunpack.c.h.b16 %v800
    %v892 = vunpack.c.l.b16 %v801
    %v893 = vunpack.c.h.b16 %v801
    %v894 = vunpack.c.l.b16 %v802
    %v895 = vunpack.c.h.b16 %v802
    %v896 = vunpack.c.l.b16 %v803
    %v897 = vunpack.c.h.b16 %v803
    %v898 = vunpack.c.l.b16 %v804
    %v899 = vunpack.c.h.b16 %v804
    %v900 = vunpack.c.l.b16 %v805
    %v901 = vunpack.c.h.b16 %v805
    %v902 = vunpack.c.l.b16 %v806
    %v903 = vunpack.c.h.b16 %v806
    %v904 = vunpack.c.l.b16 %v807
    %v905 = vunpack.c.h.b16 %v807
    %v906 = vunpack.c.l.b16 %v808
    %v907 = vunpack.c.h.b16 %v808
    %v908 = vunpack.c.l.b16 %v809
    %v909 = vunpack.c.h.b16 %v809
    %v910 = vunpack.c.l.b16 %v810
    %v911 = vunpack.c.h.b16 %v810
    %v912 = vunpack.c.l.b16 %v811
    %v913 = vunpack.c.h.b16 %v811
    %v914 = vunpack.c.l.b16 %v812
    %v915 = vunpack.c.h.b16 %v812
    %v916 = vunpack.c.l.b16 %v813
    %v917 = vunpack.c.h.b16 %v813
    %v918 = vunpack.c.l.b16 %v814
    %v919 = vunpack.c.h.b16 %v814
    %v920 = vunpack.c.l.b16 %v815
    %v921 = vunpack.c.h.b16 %v815
    %v922 = vunpack.c.l.b16 %v816
    %v923 = vunpack.c.h.b16 %v816
    %v924 = vunpack.c.l.b16 %v817
    %v925 = vunpack.c.h.b16 %v817
    %v926 = vunpack.c.l.b16 %v818
    %v927 = vunpack.c.h.b16 %v818
    %v928 = vunpack.c.l.b16 %v819
    %v929 = vunpack.c.h.b16 %v819
    %v930 = vunpack.c.l.b16 %v820
    %v931 = vunpack.c.h.b16 %v820
    %v932 = vunpack.c.l.b16 %v821
    %v933 = vunpack.c.h.b16 %v821
    %v934 = vunpack.c.l.b16 %v822
    %v935 = vunpack.c.h.b16 %v822
    %v936 = vunpack.c.l.b16 %v823
    %v937 = vunpack.c.h.b16 %v823
    %v938 = vunpack.c.l.b16 %v824
    %v939 = vunpack.c.h.b16 %v824
    %v940 = vunpack.c.l.b16 %v825
    %v941 = vunpack.c.h.b16 %v825
    %v942 = vunpack.c.l.b16 %v826
    %v943 = vunpack.c.h.b16 %v826
    %v944 = vunpack.c.l.b16 %v827
    %v945 = vunpack.c.h.b16 %v827
    %v946 = vunpack.c.l.b16 %v828
    %v947 = vunpack.c.h.b16 %v828
    %v948 = vpack.c.b16 %v888, %v884
    %v949 = vpack.c.b16 %v889, %v885
    %v950 = vpack.c.b16 %v890, %v886
    %v951 = vpack.c.b16 %v891, %v887
    %v952 = vpack.c.b16 %v896, %v892
    %v953 = vpack.c.b16 %v897, %v893
    %v954 = vpack.c.b16 %v898, %v894
    %v955 = vpack.c.b16 %v899, %v895
    %v956 = vpack.c.b16 %v904, %v900
    %v957 = vpack.c.b16 %v905, %v901
    %v958 = vpack.c.b16 %v906, %v902
    %v959 = vpack.c.b16 %v907, %v903
    %v960 = vpack.c.b16 %v912, %v908
    %v961 = vpack.c.b16 %v913, %v909
    %v962 = vpack.c.b16 %v914, %v910
    %v963 = vpack.c.b16 %v915, %v911
    %v964 = vpack.c.b16 %v920, %v916
    %v965 = vpack.c.b16 %v921, %v917
    %v966 = vpack.c.b16 %v922, %v918
    %v967 = vpack.c.b16 %v923, %v919
    %v968 = vpack.c.b16 %v928, %v924
    %v969 = vpack.c.b16 %v929, %v925
    %v970 = vpack.c.b16 %v930, %v926
    %v971 = vpack.c.b16 %v931, %v927
    %v972 = vpack.c.b16 %v936, %v932
    %v973 = vpack.c.b16 %v937, %v933
    %v974 = vpack.c.b16 %v938, %v934
    %v975 = vpack.c.b16 %v939, %v935
    %v976 = vpack.c.b16 %v944, %v940
    %v977 = vpack.c.b16 %v945, %v941
    %v978 = vpack.c.b16 %v946, %v942
    %v979 = vpack.c.b16 %v947, %v943
    %1012 = vmatprep.subr.bf16.mxu0 %v949
    %1013 = vmatpush1.bf16.msra.mxu0 %v948
    %1014 = vmatprep.subr.bf16.mxu0 %v953
    %1015 = vmatpush1.bf16.msra.mxu0 %v952
    %1016 = vmatprep.subr.bf16.mxu0 %v957
    %1017 = vmatpush1.bf16.msra.mxu0 %v956
    %1018 = vmatprep.subr.bf16.mxu0 %v961
    %1019 = vmatpush1.bf16.msra.mxu0 %v960
    %1020 = vmatprep.subr.bf16.mxu0 %v965
    %1021 = vmatpush1.bf16.msra.mxu0 %v964
    %1022 = vmatprep.subr.bf16.mxu0 %v969
    %1023 = vmatpush1.bf16.msra.mxu0 %v968
    %1024 = vmatprep.subr.bf16.mxu0 %v973
    %1025 = vmatpush1.bf16.msra.mxu0 %v972
    %1026 = vmatprep.subr.bf16.mxu0 %v977
    %1027 = vmatpush1.bf16.msra.mxu0 %v976
    %1028 = vmatprep.subr.bf16.mxu0 0
    %1029 = vmatpush1.bf16.msra.mxu0 0
    %1030 = vmatprep.subr.bf16.mxu0 0
    %1031 = vmatpush1.bf16.msra.mxu0 0
    %1032 = vmatprep.subr.bf16.mxu0 0
    %1033 = vmatpush1.bf16.msra.mxu0 0
    %1034 = vmatprep.subr.bf16.mxu0 0
    %1035 = vmatpush1.bf16.msra.mxu0 0
    %1036 = vmatprep.subr.bf16.mxu0 0
    %1037 = vmatpush1.bf16.msra.mxu0 0
    %1038 = vmatprep.subr.bf16.mxu0 0
    %1039 = vmatpush1.bf16.msra.mxu0 0
    %1040 = vmatprep.subr.bf16.mxu0 0
    %1041 = vmatpush1.bf16.msra.mxu0 0
    %1042 = vmatprep.subr.bf16.mxu0 0
    %1043 = vmatpush1.bf16.msra.mxu0 0
    %1044 = vmatprep.mubr.bf16.mxu0 0
    %1045 = vmatmul.mubr.bf16.gmra.mrb[0].mxu0 %v830
    %v1046 = vpop.f32.mrb[0].mxu0
    %v1047 = vadd.f32 %v835, %v1046
    %v1048 = vpop.f32.mrb[0].mxu0
    %v1049 = vadd.f32 %v839, %v1048
    %v1050 = vpop.f32.mrb[0].mxu0
    %v1051 = vadd.f32 %v835, %v1050
    %v1052 = vpop.f32.mrb[0].mxu0
    %v1053 = vadd.f32 %v839, %v1052
    %1054 = vdwg.mxu0
    %1055 = vmatprep.subr.bf16.mxu0 %v951
    %1056 = vmatpush1.bf16.msra.mxu0 %v950
    %1057 = vmatprep.subr.bf16.mxu0 %v955
    %1058 = vmatpush1.bf16.msra.mxu0 %v954
    %1059 = vmatprep.subr.bf16.mxu0 %v959
    %1060 = vmatpush1.bf16.msra.mxu0 %v958
    %1061 = vmatprep.subr.bf16.mxu0 %v963
    %1062 = vmatpush1.bf16.msra.mxu0 %v962
    %1063 = vmatprep.subr.bf16.mxu0 %v967
    %1064 = vmatpush1.bf16.msra.mxu0 %v966
    %1065 = vmatprep.subr.bf16.mxu0 %v971
    %1066 = vmatpush1.bf16.msra.mxu0 %v970
    %1067 = vmatprep.subr.bf16.mxu0 %v975
    %1068 = vmatpush1.bf16.msra.mxu0 %v974
    %1069 = vmatprep.subr.bf16.mxu0 %v979
    %1070 = vmatpush1.bf16.msra.mxu0 %v978
    %1071 = vmatprep.subr.bf16.mxu0 0
    %1072 = vmatpush1.bf16.msra.mxu0 0
    %1073 = vmatprep.subr.bf16.mxu0 0
    %1074 = vmatpush1.bf16.msra.mxu0 0
    %1075 = vmatprep.subr.bf16.mxu0 0
    %1076 = vmatpush1.bf16.msra.mxu0 0
    %1077 = vmatprep.subr.bf16.mxu0 0
    %1078 = vmatpush1.bf16.msra.mxu0 0
    %1079 = vmatprep.subr.bf16.mxu0 0
    %1080 = vmatpush1.bf16.msra.mxu0 0
    %1081 = vmatprep.subr.bf16.mxu0 0
    %1082 = vmatpush1.bf16.msra.mxu0 0
    %1083 = vmatprep.subr.bf16.mxu0 0
    %1084 = vmatpush1.bf16.msra.mxu0 0
    %1085 = vmatprep.subr.bf16.mxu0 0
    %1086 = vmatpush1.bf16.msra.mxu0 0
    %1087 = vmatprep.mubr.bf16.mxu0 0
    %1088 = vmatmul.mubr.bf16.gmra.mrb[0].mxu0 %v830
    %v1089 = vpop.f32.mrb[0].mxu0
    %v1090 = vadd.f32 %v843, %v1089
    %v1091 = vpop.f32.mrb[0].mxu0
    %v1092 = vadd.f32 %v847, %v1091
    %v1093 = vpop.f32.mrb[0].mxu0
    %v1094 = vadd.f32 %v843, %v1093
    %v1095 = vpop.f32.mrb[0].mxu0
    %v1096 = vadd.f32 %v847, %v1095
    %1097 = vdwg.mxu0
    %vm1098 = vcmp.gt.f32.partialorder %v1047, 0.0
    %vm1099 = vcmp.gt.f32.partialorder %v1049, 0.0
    %vm1100 = vcmp.gt.f32.partialorder %v1090, 0.0
    %vm1101 = vcmp.gt.f32.partialorder %v1092, 0.0
    %vm1102 = vcmp.gt.f32.partialorder %v1051, 0.0
    %vm1103 = vcmp.gt.f32.partialorder %v1053, 0.0
    %vm1104 = vcmp.gt.f32.partialorder %v1094, 0.0
    %vm1105 = vcmp.gt.f32.partialorder %v1096, 0.0
    %v1106 = vmul.f32 %v1047, 1.442695
    %v1107 = vpow.pop %v1106
    %v1108 = vmul.f32 %v1049, 1.442695
    %v1109 = vpow.pop %v1108
    %v1110 = vmul.f32 %v1090, 1.442695
    %v1111 = vpow.pop %v1110
    %v1112 = vmul.f32 %v1092, 1.442695
    %v1113 = vpow.pop %v1112
    %v1114 = vmul.f32 %v1051, 1.442695
    %v1115 = vpow.pop %v1114
    %v1116 = vmul.f32 %v1053, 1.442695
    %v1117 = vpow.pop %v1116
    %v1118 = vmul.f32 %v1094, 1.442695
    %v1119 = vpow.pop %v1118
    %v1120 = vmul.f32 %v1096, 1.442695
    %v1121 = vpow.pop %v1120
    %v1122 = vsub.f32 %v1107, 1.0
    %v1123 = vsub.f32 %v1109, 1.0
    %v1124 = vsub.f32 %v1111, 1.0
    %v1125 = vsub.f32 %v1113, 1.0
    %v1126 = vsub.f32 %v1115, 1.0
    %v1127 = vsub.f32 %v1117, 1.0
    %v1128 = vsub.f32 %v1119, 1.0
    %v1129 = vsub.f32 %v1121, 1.0
    %v1130 = vmul.f32 %v1122, 1.6732632
    %v1131 = vmul.f32 %v1123, 1.6732632
    %v1132 = vmul.f32 %v1124, 1.6732632
    %v1133 = vmul.f32 %v1125, 1.6732632
    %v1134 = vmul.f32 %v1126, 1.6732632
    %v1135 = vmul.f32 %v1127, 1.6732632
    %v1136 = vmul.f32 %v1128, 1.6732632
    %v1137 = vmul.f32 %v1129, 1.6732632
    %v1138 = vsel %vm1098, %v1047, %v1130
    %v1139 = vsel %vm1099, %v1049, %v1131
    %v1140 = vsel %vm1100, %v1090, %v1132
    %v1141 = vsel %vm1101, %v1092, %v1133
    %v1142 = vsel %vm1102, %v1051, %v1134
    %v1143 = vsel %vm1103, %v1053, %v1135
    %v1144 = vsel %vm1104, %v1094, %v1136
    %v1145 = vsel %vm1105, %v1096, %v1137
    %v1146 = vmul.f32 %v1138, 1.050701
    %v1147 = vmul.f32 %v1139, 1.050701
    %v1148 = vmul.f32 %v1140, 1.050701
    %v1149 = vmul.f32 %v1141, 1.050701
    %v1150 = vmul.f32 %v1142, 1.050701
    %v1151 = vmul.f32 %v1143, 1.050701
    %v1152 = vmul.f32 %v1144, 1.050701
    %v1153 = vmul.f32 %v1145, 1.050701
    %1154 = vst [vmem:[#allocation10] sm:$0xff] %v1146
    %1155 = vst [vmem:[#allocation10 + $0x8] sm:$0xff] %v1147
    %1156 = vst [vmem:[#allocation10 + $0x10] sm:$0xff] %v1148
    %1157 = vst [vmem:[#allocation10 + $0x18] sm:$0xff] %v1149
    %1158 = vst [vmem:[#allocation10 + $0x20] sm:$0xff] %v1150
    %1159 = vst [vmem:[#allocation10 + $0x28] sm:$0xff] %v1151
    %1160 = vst [vmem:[#allocation10 + $0x30] sm:$0xff] %v1152
    %1161 = vst [vmem:[#allocation10 + $0x38] sm:$0xff] %v1153
    // Predicated region
    $region46: #{tpu_custom_call.1} parent=1 // pred_check
      _
    $region47: #{tpu_custom_call.1} parent=1 // pred_check_branch
      %1163 = sbr.rel (0) target = $region49
    $region48: #{tpu_custom_call.1} parent=1 // pred_region
      %s1165 = ssub.s32 1024, 1024
      %1166 = vsyncadd [#allocation4], %s1165
      %s1167 = sshll.u32 [#allocation10], 4
      %s1168 = int_to_ptr.vmem [resolvable:$true] %s1167
      %1173 = dma.vmem_to_hbm [thread:$0]  %s1168, 1024, %s7, [#allocation4], 512, 512, 32
    $region49: #{tpu_custom_call.1} parent=1 // pred_fallthru
      _
    // Predicated region
    $region50: #{tpu_custom_call.1} parent=1 // pred_check
      _
    $region51: #{tpu_custom_call.1} parent=1 // pred_check_branch
      %1175 = sbr.rel (0) target = $region53
    $region52: #{tpu_custom_call.1} parent=1 // pred_region
      %1176 = dma.done [#allocation4], 1024
    $region53: #{tpu_custom_call.1} parent=1 // pred_fallthru
      _
    %1177 = vsyncpa [#allocation3], 1
    %1178 = vsyncpa [#allocation6], 1
    %1179 = vsyncpa [#allocation9], 1
    %1180 = vsyncpa [#allocation4], 1

// kernel: tpu_custom_call.1
$region0: #{tpu_custom_call.1}
  #allocation0 [shape = 'u32[]', space=smem, size = 0x4, offset = 0x4, fixed_abs, tag = 'smem constant byte address 0x4 - core index']
  #allocation1 [shape = 'u32[144,128]{1,0:T(1,128)}', space=vmem, size = 0x12000, scoped, tag = 'internal scratch']
  %s0 = inlined_call_operand.hbm [shape: f32[16,512], index: 0, kind: input, shape index: {}]
  %s1 = inlined_call_operand.hbm [shape: bf16[512,256], index: 1, kind: input, shape index: {}]
  %s2 = inlined_call_operand.vmem [shape: f32[1,256], index: 2, kind: input, shape index: {}]
  %s3 = inlined_call_operand.hbm [shape: bf16[256,128], index: 3, kind: input, shape index: {}]
  %s4 = inlined_call_operand.vmem [shape: f32[1,128], index: 4, kind: input, shape index: {}]
  %s5 = inlined_call_operand.hbm [shape: bf16[128,512], index: 5, kind: input, shape index: {}]
  %s6 = inlined_call_operand.vmem [shape: f32[1,512], index: 6, kind: input, shape index: {}]
  %s7 = inlined_call_operand.hbm [shape: f32[16,512], index: 7, kind: output, shape index: {}]
  %s8 = sld [smem:[#allocation0]]
  $region54: #{tpu_custom_call.1} parent=0
    _
  %s10 = ssub.s32 1, %s8
  %s11 = scalar_select 0, %s10, %s8
  $region1: #{tpu_custom_call.1} parent=0
    #allocation2 [shape = 'u8[32768]{0}', space=vmem, size = 0x8000, scoped, tag = 'input window, operand 0, single buffered']
    #allocation3 [shape = 's32[1]{0}', space=sflag, size = 0x4, scoped, tag = 'scoped memory for tpu_custom_call.1']
    #allocation4 [shape = 's32[1]{0}', space=sflag, size = 0x4, scoped, tag = 'scoped memory for tpu_custom_call.1']
    #allocation5 [shape = 'u8[262144]{0}', space=vmem, size = 0x40000, scoped, tag = 'input window, operand 1, single buffered']
    #allocation6 [shape = 's32[1]{0}', space=sflag, size = 0x4, scoped, tag = 'scoped memory for tpu_custom_call.1']
    #allocation7 [shape = 'u8[65536]{0}', space=vmem, size = 0x10000, scoped, tag = 'input window, operand 3, single buffered']
    #allocation8 [shape = 'u8[131072]{0}', space=vmem, size = 0x20000, scoped, tag = 'input window, operand 5, single buffered']
    #allocation9 [shape = 's32[1]{0}', space=sflag, size = 0x4, scoped, tag = 'scoped memory for tpu_custom_call.1']
    #allocation10 [shape = 'u8[32768]{0}', space=vmem, size = 0x8000, scoped, tag = 'output window, operand 0, single buffered']
    %12 = vsyncpa [#allocation3], 0
    %13 = vsyncpa [#allocation6], 0
    %14 = vsyncpa [#allocation9], 0
    %15 = vsyncpa [#allocation4], 0
    // Predicated region
    $region2: #{tpu_custom_call.1} parent=1 // pred_check
      _
    $region3: #{tpu_custom_call.1} parent=1 // pred_check_branch
      %17 = sbr.rel (0) target = $region5
    $region4: #{tpu_custom_call.1} parent=1 // pred_region
      %s19 = ssub.s32 1024, 1024
      %20 = vsyncadd [#allocation3], %s19
      %s21 = sshll.u32 [#allocation2], 4
      %s22 = int_to_ptr.vmem [resolvable:$true] %s21
      %27 = dma.hbm_to_vmem [thread:$0]  %s0, 1024, %s22, [#allocation3], 512, 512, 32
    $region5: #{tpu_custom_call.1} parent=1 // pred_fallthru
      _
    // Predicated region
    $region6: #{tpu_custom_call.1} parent=1 // pred_check
      _
    $region7: #{tpu_custom_call.1} parent=1 // pred_check_branch
      %29 = sbr.rel (0) target = $region9
    $region8: #{tpu_custom_call.1} parent=1 // pred_region
      %s31 = ssub.s32 8192, 8192
      %32 = vsyncadd [#allocation6], %s31
      %s33 = sshll.u32 [#allocation5], 4
      %s34 = int_to_ptr.vmem [resolvable:$true] %s33
      %39 = dma.hbm_to_vmem [thread:$0]  %s1, 8192, %s34, [#allocation6], 128, 128, 8
    $region9: #{tpu_custom_call.1} parent=1 // pred_fallthru
      _
    // Predicated region
    $region10: #{tpu_custom_call.1} parent=1 // pred_check
      _
    $region11: #{tpu_custom_call.1} parent=1 // pred_check_branch
      %41 = sbr.rel (0) target = $region13
    $region12: #{tpu_custom_call.1} parent=1 // pred_region
      _
    $region13: #{tpu_custom_call.1} parent=1 // pred_fallthru
      _
    // Predicated region
    $region14: #{tpu_custom_call.1} parent=1 // pred_check
      _
    $region15: #{tpu_custom_call.1} parent=1 // pred_check_branch
      %43 = sbr.rel (0) target = $region17
    $region16: #{tpu_custom_call.1} parent=1 // pred_region
      %s45 = ssub.s32 2048, 2048
      %46 = vsyncadd [#allocation6], %s45
      %s47 = sshll.u32 [#allocation7], 4
      %s48 = int_to_ptr.vmem [resolvable:$true] %s47
      %53 = dma.hbm_to_vmem [thread:$0]  %s3, 2048, %s48, [#allocation6], 64, 64, 4
    $region17: #{tpu_custom_call.1} parent=1 // pred_fallthru
      _
    // Predicated region
    $region18: #{tpu_custom_call.1} parent=1 // pred_check
      _
    $region19: #{tpu_custom_call.1} parent=1 // pred_check_branch
      %55 = sbr.rel (0) target = $region21
    $region20: #{tpu_custom_call.1} parent=1 // pred_region
      _
    $region21: #{tpu_custom_call.1} parent=1 // pred_fallthru
      _
    // Predicated region
    $region22: #{tpu_custom_call.1} parent=1 // pred_check
      _
    $region23: #{tpu_custom_call.1} parent=1 // pred_check_branch
      %57 = sbr.rel (0) target = $region25
    $region24: #{tpu_custom_call.1} parent=1 // pred_region
      %s59 = ssub.s32 4096, 4096
      %60 = vsyncadd [#allocation9], %s59
      %s61 = sshll.u32 [#allocation8], 4
      %s62 = int_to_ptr.vmem [resolvable:$true] %s61
      %67 = dma.hbm_to_vmem [thread:$0]  %s5, 4096, %s62, [#allocation9], 256, 256, 16
    $region25: #{tpu_custom_call.1} parent=1 // pred_fallthru
      _
    // Predicated region
    $region26: #{tpu_custom_call.1} parent=1 // pred_check
      _
    $region27: #{tpu_custom_call.1} parent=1 // pred_check_branch
      %69 = sbr.rel (0) target = $region29
    $region28: #{tpu_custom_call.1} parent=1 // pred_region
      _
    $region29: #{tpu_custom_call.1} parent=1 // pred_fallthru
      _
    // Predicated region
    $region30: #{tpu_custom_call.1} parent=1 // pred_check
      _
    $region31: #{tpu_custom_call.1} parent=1 // pred_check_branch
      %71 = sbr.rel (0) target = $region33
    $region32: #{tpu_custom_call.1} parent=1 // pred_region
      %72 = dma.done [#allocation3], 1024
    $region33: #{tpu_custom_call.1} parent=1 // pred_fallthru
      _
    // Predicated region
    $region34: #{tpu_custom_call.1} parent=1 // pred_check
      _
    $region35: #{tpu_custom_call.1} parent=1 // pred_check_branch
      %74 = sbr.rel (0) target = $region37
    $region36: #{tpu_custom_call.1} parent=1 // pred_region
      %75 = dma.done [#allocation6], 8192
    $region37: #{tpu_custom_call.1} parent=1 // pred_fallthru
      _
    // Predicated region
    $region38: #{tpu_custom_call.1} parent=1 // pred_check
      _
    $region39: #{tpu_custom_call.1} parent=1 // pred_check_branch
      %77 = sbr.rel (0) target = $region41
    $region40: #{tpu_custom_call.1} parent=1 // pred_region
      %78 = dma.done [#allocation6], 2048
    $region41: #{tpu_custom_call.1} parent=1 // pred_fallthru
      _
    // Predicated region
    $region42: #{tpu_custom_call.1} parent=1 // pred_check
      _
    $region43: #{tpu_custom_call.1} parent=1 // pred_check_branch
      %80 = sbr.rel (0) target = $region45
    $region44: #{tpu_custom_call.1} parent=1 // pred_region
      %81 = dma.done [#allocation9], 4096
    $region45: #{tpu_custom_call.1} parent=1 // pred_fallthru
      _
    %v83 = vld [vmem:[#allocation2] sm:$0xff]
    %v84 = vld [vmem:[#allocation2 + $0x8] sm:$0xff]
    %v85 = vld [vmem:[#allocation2 + $0x10] sm:$0xff]
    %v86 = vld [vmem:[#allocation2 + $0x18] sm:$0xff]
    %v87 = vld [vmem:[#allocation2 + $0x20] sm:$0xff]
    %v88 = vld [vmem:[#allocation2 + $0x28] sm:$0xff]
    %v89 = vld [vmem:[#allocation2 + $0x30] sm:$0xff]
    %v90 = vld [vmem:[#allocation2 + $0x38] sm:$0xff]
    %v91 = vld [vmem:[#allocation5] sm:$0xff]
    %v92 = vld [vmem:[#allocation5 + $0x8] sm:$0xff]
    %v93 = vld [vmem:[#allocation5 + $0x10] sm:$0xff]
    %v94 = vld [vmem:[#allocation5 + $0x18] sm:$0xff]
    %v95 = vld [vmem:[#allocation5 + $0x20] sm:$0xff]
    %v96 = vld [vmem:[#allocation5 + $0x28] sm:$0xff]
    %v97 = vld [vmem:[#allocation5 + $0x30] sm:$0xff]
    %v98 = vld [vmem:[#allocation5 + $0x38] sm:$0xff]
    %v99 = vld [vmem:[#allocation5 + $0x40] sm:$0xff]
    %v100 = vld [vmem:[#allocation5 + $0x48] sm:$0xff]
    %v101 = vld [vmem:[#allocation5 + $0x50] sm:$0xff]
    %v102 = vld [vmem:[#allocation5 + $0x58] sm:$0xff]
    %v103 = vld [vmem:[#allocation5 + $0x60] sm:$0xff]
    %v104 = vld [vmem:[#allocation5 + $0x68] sm:$0xff]
    %v105 = vld [vmem:[#allocation5 + $0x70] sm:$0xff]
    %v106 = vld [vmem:[#allocation5 + $0x78] sm:$0xff]
    %v107 = vld [vmem:[#allocation5 + $0x80] sm:$0xff]
    %v108 = vld [vmem:[#allocation5 + $0x88] sm:$0xff]
    %v109 = vld [vmem:[#allocation5 + $0x90] sm:$0xff]
    %v110 = vld [vmem:[#allocation5 + $0x98] sm:$0xff]
    %v111 = vld [vmem:[#allocation5 + $0xa0] sm:$0xff]
    %v112 = vld [vmem:[#allocation5 + $0xa8] sm:$0xff]
    %v113 = vld [vmem:[#allocation5 + $0xb0] sm:$0xff]
    %v114 = vld [vmem:[#allocation5 + $0xb8] sm:$0xff]
    %v115 = vld [vmem:[#allocation5 + $0xc0] sm:$0xff]
    %v116 = vld [vmem:[#allocation5 + $0xc8] sm:$0xff]
    %v117 = vld [vmem:[#allocation5 + $0xd0] sm:$0xff]
    %v118 = vld [vmem:[#allocation5 + $0xd8] sm:$0xff]
    %v119 = vld [vmem:[#allocation5 + $0xe0] sm:$0xff]
    %v120 = vld [vmem:[#allocation5 + $0xe8] sm:$0xff]
    %v121 = vld [vmem:[#allocation5 + $0xf0] sm:$0xff]
    %v122 = vld [vmem:[#allocation5 + $0xf8] sm:$0xff]
    %v123 = vld [vmem:[#allocation5 + $0x100] sm:$0xff]
    %v124 = vld [vmem:[#allocation5 + $0x108] sm:$0xff]
    %v125 = vld [vmem:[#allocation5 + $0x110] sm:$0xff]
    %v126 = vld [vmem:[#allocation5 + $0x118] sm:$0xff]
    %v127 = vld [vmem:[#allocation5 + $0x120] sm:$0xff]
    %v128 = vld [vmem:[#allocation5 + $0x128] sm:$0xff]
    %v129 = vld [vmem:[#allocation5 + $0x130] sm:$0xff]
    %v130 = vld [vmem:[#allocation5 + $0x138] sm:$0xff]
    %v131 = vld [vmem:[#allocation5 + $0x140] sm:$0xff]
    %v132 = vld [vmem:[#allocation5 + $0x148] sm:$0xff]
    %v133 = vld [vmem:[#allocation5 + $0x150] sm:$0xff]
    %v134 = vld [vmem:[#allocation5 + $0x158] sm:$0xff]
    %v135 = vld [vmem:[#allocation5 + $0x160] sm:$0xff]
    %v136 = vld [vmem:[#allocation5 + $0x168] sm:$0xff]
    %v137 = vld [vmem:[#allocation5 + $0x170] sm:$0xff]
    %v138 = vld [vmem:[#allocation5 + $0x178] sm:$0xff]
    %v139 = vld [vmem:[#allocation5 + $0x180] sm:$0xff]
    %v140 = vld [vmem:[#allocation5 + $0x188] sm:$0xff]
    %v141 = vld [vmem:[#allocation5 + $0x190] sm:$0xff]
    %v142 = vld [vmem:[#allocation5 + $0x198] sm:$0xff]
    %v143 = vld [vmem:[#allocation5 + $0x1a0] sm:$0xff]
    %v144 = vld [vmem:[#allocation5 + $0x1a8] sm:$0xff]
    %v145 = vld [vmem:[#allocation5 + $0x1b0] sm:$0xff]
    %v146 = vld [vmem:[#allocation5 + $0x1b8] sm:$0xff]
    %v147 = vld [vmem:[#allocation5 + $0x1c0] sm:$0xff]
    %v148 = vld [vmem:[#allocation5 + $0x1c8] sm:$0xff]
    %v149 = vld [vmem:[#allocation5 + $0x1d0] sm:$0xff]
    %v150 = vld [vmem:[#allocation5 + $0x1d8] sm:$0xff]
    %v151 = vld [vmem:[#allocation5 + $0x1e0] sm:$0xff]
    %v152 = vld [vmem:[#allocation5 + $0x1e8] sm:$0xff]
    %v153 = vld [vmem:[#allocation5 + $0x1f0] sm:$0xff]
    %v154 = vld [vmem:[#allocation5 + $0x1f8] sm:$0xff]
    %v155 = vld [vmem:[%s2] sm:$0x3]
    %v156 = vpack.c.bf16 %v87, %v83
    %v157 = vpack.c.bf16 %v88, %v84
    %v158 = vpack.c.bf16 %v89, %v85
    %v159 = vpack.c.bf16 %v90, %v86
    %v161 = vlaneseq
    %v162 = vshrl.u32 %v161, 7
    %v163 = vsub.s32 0, %v162
    %v164 = vrot.slane %v155, %v163
    %v165 = vlaneseq
    %v166 = vshrl.u32 %v165, 7
    %v167 = vsub.s32 1, %v166
    %v168 = vrot.slane %v155, %v167
    %v235 = vunpack.c.l.b16 %v91
    %v236 = vunpack.c.h.b16 %v91
    %v237 = vunpack.c.l.b16 %v92
    %v238 = vunpack.c.h.b16 %v92
    %v239 = vunpack.c.l.b16 %v93
    %v240 = vunpack.c.h.b16 %v93
    %v241 = vunpack.c.l.b16 %v94
    %v242 = vunpack.c.h.b16 %v94
    %v243 = vunpack.c.l.b16 %v95
    %v244 = vunpack.c.h.b16 %v95
    %v245 = vunpack.c.l.b16 %v96
    %v246 = vunpack.c.h.b16 %v96
    %v247 = vunpack.c.l.b16 %v97
    %v248 = vunpack.c.h.b16 %v97
    %v249 = vunpack.c.l.b16 %v98
    %v250 = vunpack.c.h.b16 %v98
    %v251 = vunpack.c.l.b16 %v99
    %v252 = vunpack.c.h.b16 %v99
    %v253 = vunpack.c.l.b16 %v100
    %v254 = vunpack.c.h.b16 %v100
    %v255 = vunpack.c.l.b16 %v101
    %v256 = vunpack.c.h.b16 %v101
    %v257 = vunpack.c.l.b16 %v102
    %v258 = vunpack.c.h.b16 %v102
    %v259 = vunpack.c.l.b16 %v103
    %v260 = vunpack.c.h.b16 %v103
    %v261 = vunpack.c.l.b16 %v104
    %v262 = vunpack.c.h.b16 %v104
    %v263 = vunpack.c.l.b16 %v105
    %v264 = vunpack.c.h.b16 %v105
    %v265 = vunpack.c.l.b16 %v106
    %v266 = vunpack.c.h.b16 %v106
    %v267 = vunpack.c.l.b16 %v107
    %v268 = vunpack.c.h.b16 %v107
    %v269 = vunpack.c.l.b16 %v108
    %v270 = vunpack.c.h.b16 %v108
    %v271 = vunpack.c.l.b16 %v109
    %v272 = vunpack.c.h.b16 %v109
    %v273 = vunpack.c.l.b16 %v110
    %v274 = vunpack.c.h.b16 %v110
    %v275 = vunpack.c.l.b16 %v111
    %v276 = vunpack.c.h.b16 %v111
    %v277 = vunpack.c.l.b16 %v112
    %v278 = vunpack.c.h.b16 %v112
    %v279 = vunpack.c.l.b16 %v113
    %v280 = vunpack.c.h.b16 %v113
    %v281 = vunpack.c.l.b16 %v114
    %v282 = vunpack.c.h.b16 %v114
    %v283 = vunpack.c.l.b16 %v115
    %v284 = vunpack.c.h.b16 %v115
    %v285 = vunpack.c.l.b16 %v116
    %v286 = vunpack.c.h.b16 %v116
    %v287 = vunpack.c.l.b16 %v117
    %v288 = vunpack.c.h.b16 %v117
    %v289 = vunpack.c.l.b16 %v118
    %v290 = vunpack.c.h.b16 %v118
    %v291 = vunpack.c.l.b16 %v119
    %v292 = vunpack.c.h.b16 %v119
    %v293 = vunpack.c.l.b16 %v120
    %v294 = vunpack.c.h.b16 %v120
    %v295 = vunpack.c.l.b16 %v121
    %v296 = vunpack.c.h.b16 %v121
    %v297 = vunpack.c.l.b16 %v122
    %v298 = vunpack.c.h.b16 %v122
    %v299 = vunpack.c.l.b16 %v123
    %v300 = vunpack.c.h.b16 %v123
    %v301 = vunpack.c.l.b16 %v124
    %v302 = vunpack.c.h.b16 %v124
    %v303 = vunpack.c.l.b16 %v125
    %v304 = vunpack.c.h.b16 %v125
    %v305 = vunpack.c.l.b16 %v126
    %v306 = vunpack.c.h.b16 %v126
    %v307 = vunpack.c.l.b16 %v127
    %v308 = vunpack.c.h.b16 %v127
    %v309 = vunpack.c.l.b16 %v128
    %v310 = vunpack.c.h.b16 %v128
    %v311 = vunpack.c.l.b16 %v129
    %v312 = vunpack.c.h.b16 %v129
    %v313 = vunpack.c.l.b16 %v130
    %v314 = vunpack.c.h.b16 %v130
    %v315 = vunpack.c.l.b16 %v131
    %v316 = vunpack.c.h.b16 %v131
    %v317 = vunpack.c.l.b16 %v132
    %v318 = vunpack.c.h.b16 %v132
    %v319 = vunpack.c.l.b16 %v133
    %v320 = vunpack.c.h.b16 %v133
    %v321 = vunpack.c.l.b16 %v134
    %v322 = vunpack.c.h.b16 %v134
    %v323 = vunpack.c.l.b16 %v135
    %v324 = vunpack.c.h.b16 %v135
    %v325 = vunpack.c.l.b16 %v136
    %v326 = vunpack.c.h.b16 %v136
    %v327 = vunpack.c.l.b16 %v137
    %v328 = vunpack.c.h.b16 %v137
    %v329 = vunpack.c.l.b16 %v138
    %v330 = vunpack.c.h.b16 %v138
    %v331 = vunpack.c.l.b16 %v139
    %v332 = vunpack.c.h.b16 %v139
    %v333 = vunpack.c.l.b16 %v140
    %v334 = vunpack.c.h.b16 %v140
    %v335 = vunpack.c.l.b16 %v141
    %v336 = vunpack.c.h.b16 %v141
    %v337 = vunpack.c.l.b16 %v142
    %v338 = vunpack.c.h.b16 %v142
    %v339 = vunpack.c.l.b16 %v143
    %v340 = vunpack.c.h.b16 %v143
    %v341 = vunpack.c.l.b16 %v144
    %v342 = vunpack.c.h.b16 %v144
    %v343 = vunpack.c.l.b16 %v145
    %v344 = vunpack.c.h.b16 %v145
    %v345 = vunpack.c.l.b16 %v146
    %v346 = vunpack.c.h.b16 %v146
    %v347 = vunpack.c.l.b16 %v147
    %v348 = vunpack.c.h.b16 %v147
    %v349 = vunpack.c.l.b16 %v148
    %v350 = vunpack.c.h.b16 %v148
    %v351 = vunpack.c.l.b16 %v149
    %v352 = vunpack.c.h.b16 %v149
    %v353 = vunpack.c.l.b16 %v150
    %v354 = vunpack.c.h.b16 %v150
    %v355 = vunpack.c.l.b16 %v151
    %v356 = vunpack.c.h.b16 %v151
    %v357 = vunpack.c.l.b16 %v152
    %v358 = vunpack.c.h.b16 %v152
    %v359 = vunpack.c.l.b16 %v153
    %v360 = vunpack.c.h.b16 %v153
    %v361 = vunpack.c.l.b16 %v154
    %v362 = vunpack.c.h.b16 %v154
    %v363 = vpack.c.b16 %v237, %v235
    %v364 = vpack.c.b16 %v238, %v236
    %v365 = vpack.c.b16 %v241, %v239
    %v366 = vpack.c.b16 %v242, %v240
    %v367 = vpack.c.b16 %v245, %v243
    %v368 = vpack.c.b16 %v246, %v244
    %v369 = vpack.c.b16 %v249, %v247
    %v370 = vpack.c.b16 %v250, %v248
    %v371 = vpack.c.b16 %v253, %v251
    %v372 = vpack.c.b16 %v254, %v252
    %v373 = vpack.c.b16 %v257, %v255
    %v374 = vpack.c.b16 %v258, %v256
    %v375 = vpack.c.b16 %v261, %v259
    %v376 = vpack.c.b16 %v262, %v260
    %v377 = vpack.c.b16 %v265, %v263
    %v378 = vpack.c.b16 %v266, %v264
    %v379 = vpack.c.b16 %v269, %v267
    %v380 = vpack.c.b16 %v270, %v268
    %v381 = vpack.c.b16 %v273, %v271
    %v382 = vpack.c.b16 %v274, %v272
    %v383 = vpack.c.b16 %v277, %v275
    %v384 = vpack.c.b16 %v278, %v276
    %v385 = vpack.c.b16 %v281, %v279
    %v386 = vpack.c.b16 %v282, %v280
    %v387 = vpack.c.b16 %v285, %v283
    %v388 = vpack.c.b16 %v286, %v284
    %v389 = vpack.c.b16 %v289, %v287
    %v390 = vpack.c.b16 %v290, %v288
    %v391 = vpack.c.b16 %v293, %v291
    %v392 = vpack.c.b16 %v294, %v292
    %v393 = vpack.c.b16 %v297, %v295
    %v394 = vpack.c.b16 %v298, %v296
    %v395 = vpack.c.b16 %v301, %v299
    %v396 = vpack.c.b16 %v302, %v300
    %v397 = vpack.c.b16 %v305, %v303
    %v398 = vpack.c.b16 %v306, %v304
    %v399 = vpack.c.b16 %v309, %v307
    %v400 = vpack.c.b16 %v310, %v308
    %v401 = vpack.c.b16 %v313, %v311
    %v402 = vpack.c.b16 %v314, %v312
    %v403 = vpack.c.b16 %v317, %v315
    %v404 = vpack.c.b16 %v318, %v316
    %v405 = vpack.c.b16 %v321, %v319
    %v406 = vpack.c.b16 %v322, %v320
    %v407 = vpack.c.b16 %v325, %v323
    %v408 = vpack.c.b16 %v326, %v324
    %v409 = vpack.c.b16 %v329, %v327
    %v410 = vpack.c.b16 %v330, %v328
    %v411 = vpack.c.b16 %v333, %v331
    %v412 = vpack.c.b16 %v334, %v332
    %v413 = vpack.c.b16 %v337, %v335
    %v414 = vpack.c.b16 %v338, %v336
    %v415 = vpack.c.b16 %v341, %v339
    %v416 = vpack.c.b16 %v342, %v340
    %v417 = vpack.c.b16 %v345, %v343
    %v418 = vpack.c.b16 %v346, %v344
    %v419 = vpack.c.b16 %v349, %v347
    %v420 = vpack.c.b16 %v350, %v348
    %v421 = vpack.c.b16 %v353, %v351
    %v422 = vpack.c.b16 %v354, %v352
    %v423 = vpack.c.b16 %v357, %v355
    %v424 = vpack.c.b16 %v358, %v356
    %v425 = vpack.c.b16 %v361, %v359
    %v426 = vpack.c.b16 %v362, %v360
    %491 = vmatprep.subr.bf16.mxu0 %v364
    %492 = vmatpush1.bf16.msra.mxu0 %v363
    %493 = vmatprep.subr.bf16.mxu0 %v366
    %494 = vmatpush1.bf16.msra.mxu0 %v365
    %495 = vmatprep.subr.bf16.mxu0 %v368
    %496 = vmatpush1.bf16.msra.mxu0 %v367
    %497 = vmatprep.subr.bf16.mxu0 %v370
    %498 = vmatpush1.bf16.msra.mxu0 %v369
    %499 = vmatprep.subr.bf16.mxu0 %v372
    %500 = vmatpush1.bf16.msra.mxu0 %v371
    %501 = vmatprep.subr.bf16.mxu0 %v374
    %502 = vmatpush1.bf16.msra.mxu0 %v373
    %503 = vmatprep.subr.bf16.mxu0 %v376
    %504 = vmatpush1.bf16.msra.mxu0 %v375
    %505 = vmatprep.subr.bf16.mxu0 %v378
    %506 = vmatpush1.bf16.msra.mxu0 %v377
    %507 = vmatprep.subr.bf16.mxu0 %v380
    %508 = vmatpush1.bf16.msra.mxu0 %v379
    %509 = vmatprep.subr.bf16.mxu0 %v382
    %510 = vmatpush1.bf16.msra.mxu0 %v381
    %511 = vmatprep.subr.bf16.mxu0 %v384
    %512 = vmatpush1.bf16.msra.mxu0 %v383
    %513 = vmatprep.subr.bf16.mxu0 %v386
    %514 = vmatpush1.bf16.msra.mxu0 %v385
    %515 = vmatprep.subr.bf16.mxu0 %v388
    %516 = vmatpush1.bf16.msra.mxu0 %v387
    %517 = vmatprep.subr.bf16.mxu0 %v390
    %518 = vmatpush1.bf16.msra.mxu0 %v389
    %519 = vmatprep.subr.bf16.mxu0 %v392
    %520 = vmatpush1.bf16.msra.mxu0 %v391
    %521 = vmatprep.subr.bf16.mxu0 %v394
    %522 = vmatpush1.bf16.msra.mxu0 %v393
    %523 = vmatprep.mubr.bf16.mxu0 %v157
    %524 = vmatmul.mubr.bf16.gmra.mrb[0].mxu0 %v156
    %v525 = vpop.f32.mrb[0].mxu0
    %v526 = vadd.f32 %v164, %v525
    %v527 = vpop.f32.mrb[0].mxu0
    %v528 = vadd.f32 %v168, %v527
    %v529 = vpop.f32.mrb[0].mxu0
    %v530 = vadd.f32 %v164, %v529
    %v531 = vpop.f32.mrb[0].mxu0
    %v532 = vadd.f32 %v168, %v531
    %533 = vdwg.mxu0
    %534 = vmatprep.subr.bf16.mxu0 %v396
    %535 = vmatpush1.bf16.msra.mxu0 %v395
    %536 = vmatprep.subr.bf16.mxu0 %v398
    %537 = vmatpush1.bf16.msra.mxu0 %v397
    %538 = vmatprep.subr.bf16.mxu0 %v400
    %539 = vmatpush1.bf16.msra.mxu0 %v399
    %540 = vmatprep.subr.bf16.mxu0 %v402
    %541 = vmatpush1.bf16.msra.mxu0 %v401
    %542 = vmatprep.subr.bf16.mxu0 %v404
    %543 = vmatpush1.bf16.msra.mxu0 %v403
    %544 = vmatprep.subr.bf16.mxu0 %v406
    %545 = vmatpush1.bf16.msra.mxu0 %v405
    %546 = vmatprep.subr.bf16.mxu0 %v408
    %547 = vmatpush1.bf16.msra.mxu0 %v407
    %548 = vmatprep.subr.bf16.mxu0 %v410
    %549 = vmatpush1.bf16.msra.mxu0 %v409
    %550 = vmatprep.subr.bf16.mxu0 %v412
    %551 = vmatpush1.bf16.msra.mxu0 %v411
    %552 = vmatprep.subr.bf16.mxu0 %v414
    %553 = vmatpush1.bf16.msra.mxu0 %v413
    %554 = vmatprep.subr.bf16.mxu0 %v416
    %555 = vmatpush1.bf16.msra.mxu0 %v415
    %556 = vmatprep.subr.bf16.mxu0 %v418
    %557 = vmatpush1.bf16.msra.mxu0 %v417
    %558 = vmatprep.subr.bf16.mxu0 %v420
    %559 = vmatpush1.bf16.msra.mxu0 %v419
    %560 = vmatprep.subr.bf16.mxu0 %v422
    %561 = vmatpush1.bf16.msra.mxu0 %v421
    %562 = vmatprep.subr.bf16.mxu0 %v424
    %563 = vmatpush1.bf16.msra.mxu0 %v423
    %564 = vmatprep.subr.bf16.mxu0 %v426
    %565 = vmatpush1.bf16.msra.mxu0 %v425
    %566 = vmatprep.mubr.bf16.mxu0 %v159
    %567 = vmatmul.mubr.bf16.gmra.mrb[0].mxu0 %v158
    %v568 = vpop.f32.mrb[0].mxu0
    %v569 = vadd.f32 %v526, %v568
    %v570 = vpop.f32.mrb[0].mxu0
    %v571 = vadd.f32 %v528, %v570
    %v572 = vpop.f32.mrb[0].mxu0
    %v573 = vadd.f32 %v530, %v572
    %v574 = vpop.f32.mrb[0].mxu0
    %v575 = vadd.f32 %v532, %v574
    %576 = vdwg.mxu0
    %vm577 = vcmp.gt.f32.partialorder %v569, 0.0
    %vm578 = vcmp.gt.f32.partialorder %v571, 0.0
    %vm579 = vcmp.gt.f32.partialorder %v573, 0.0
    %vm580 = vcmp.gt.f32.partialorder %v575, 0.0
    %v581 = vmul.f32 %v569, 1.442695
    %v582 = vpow.pop %v581
    %v583 = vmul.f32 %v571, 1.442695
    %v584 = vpow.pop %v583
    %v585 = vmul.f32 %v573, 1.442695
    %v586 = vpow.pop %v585
    %v587 = vmul.f32 %v575, 1.442695
    %v588 = vpow.pop %v587
    %v589 = vsub.f32 %v582, 1.0
    %v590 = vsub.f32 %v584, 1.0
    %v591 = vsub.f32 %v586, 1.0
    %v592 = vsub.f32 %v588, 1.0
    %v593 = vmul.f32 %v589, 1.6732632
    %v594 = vmul.f32 %v590, 1.6732632
    %v595 = vmul.f32 %v591, 1.6732632
    %v596 = vmul.f32 %v592, 1.6732632
    %v597 = vsel %vm577, %v569, %v593
    %v598 = vsel %vm578, %v571, %v594
    %v599 = vsel %vm579, %v573, %v595
    %v600 = vsel %vm580, %v575, %v596
    %v601 = vmul.f32 %v597, 1.050701
    %v602 = vmul.f32 %v598, 1.050701
    %v603 = vmul.f32 %v599, 1.050701
    %v604 = vmul.f32 %v600, 1.050701
    %v605 = vld [vmem:[#allocation7] sm:$0xf]
    %v606 = vld [vmem:[#allocation7 + $0x4] sm:$0xf]
    %v607 = vld [vmem:[#allocation7 + $0x8] sm:$0xf]
    %v608 = vld [vmem:[#allocation7 + $0xc] sm:$0xf]
    %v609 = vld [vmem:[#allocation7 + $0x10] sm:$0xf]
    %v610 = vld [vmem:[#allocation7 + $0x14] sm:$0xf]
    %v611 = vld [vmem:[#allocation7 + $0x18] sm:$0xf]
    %v612 = vld [vmem:[#allocation7 + $0x1c] sm:$0xf]
    %v613 = vld [vmem:[#allocation7 + $0x20] sm:$0xf]
    %v614 = vld [vmem:[#allocation7 + $0x24] sm:$0xf]
    %v615 = vld [vmem:[#allocation7 + $0x28] sm:$0xf]
    %v616 = vld [vmem:[#allocation7 + $0x2c] sm:$0xf]
    %v617 = vld [vmem:[#allocation7 + $0x30] sm:$0xf]
    %v618 = vld [vmem:[#allocation7 + $0x34] sm:$0xf]
    %v619 = vld [vmem:[#allocation7 + $0x38] sm:$0xf]
    %v620 = vld [vmem:[#allocation7 + $0x3c] sm:$0xf]
    %v621 = vld [vmem:[#allocation7 + $0x40] sm:$0xf]
    %v622 = vld [vmem:[#allocation7 + $0x44] sm:$0xf]
    %v623 = vld [vmem:[#allocation7 + $0x48] sm:$0xf]
    %v624 = vld [vmem:[#allocation7 + $0x4c] sm:$0xf]
    %v625 = vld [vmem:[#allocation7 + $0x50] sm:$0xf]
    %v626 = vld [vmem:[#allocation7 + $0x54] sm:$0xf]
    %v627 = vld [vmem:[#allocation7 + $0x58] sm:$0xf]
    %v628 = vld [vmem:[#allocation7 + $0x5c] sm:$0xf]
    %v629 = vld [vmem:[#allocation7 + $0x60] sm:$0xf]
    %v630 = vld [vmem:[#allocation7 + $0x64] sm:$0xf]
    %v631 = vld [vmem:[#allocation7 + $0x68] sm:$0xf]
    %v632 = vld [vmem:[#allocation7 + $0x6c] sm:$0xf]
    %v633 = vld [vmem:[#allocation7 + $0x70] sm:$0xf]
    %v634 = vld [vmem:[#allocation7 + $0x74] sm:$0xf]
    %v635 = vld [vmem:[#allocation7 + $0x78] sm:$0xf]
    %v636 = vld [vmem:[#allocation7 + $0x7c] sm:$0xf]
    %v637 = vld [vmem:[%s4] sm:$0x1]
    %v638 = vpack.c.bf16 %v603, %v601
    %v639 = vpack.c.bf16 %v604, %v602
    %v641 = vlaneseq
    %v642 = vshrl.u32 %v641, 7
    %v643 = vsub.s32 0, %v642
    %v644 = vrot.slane %v637, %v643
    %v678 = vunpack.c.l.b16 %v605
    %v679 = vunpack.c.l.b16 %v606
    %v680 = vunpack.c.l.b16 %v607
    %v681 = vunpack.c.l.b16 %v608
    %v682 = vunpack.c.l.b16 %v609
    %v683 = vunpack.c.l.b16 %v610
    %v684 = vunpack.c.l.b16 %v611
    %v685 = vunpack.c.l.b16 %v612
    %v686 = vunpack.c.l.b16 %v613
    %v687 = vunpack.c.l.b16 %v614
    %v688 = vunpack.c.l.b16 %v615
    %v689 = vunpack.c.l.b16 %v616
    %v690 = vunpack.c.l.b16 %v617
    %v691 = vunpack.c.l.b16 %v618
    %v692 = vunpack.c.l.b16 %v619
    %v693 = vunpack.c.l.b16 %v620
    %v694 = vunpack.c.l.b16 %v621
    %v695 = vunpack.c.l.b16 %v622
    %v696 = vunpack.c.l.b16 %v623
    %v697 = vunpack.c.l.b16 %v624
    %v698 = vunpack.c.l.b16 %v625
    %v699 = vunpack.c.l.b16 %v626
    %v700 = vunpack.c.l.b16 %v627
    %v701 = vunpack.c.l.b16 %v628
    %v702 = vunpack.c.l.b16 %v629
    %v703 = vunpack.c.l.b16 %v630
    %v704 = vunpack.c.l.b16 %v631
    %v705 = vunpack.c.l.b16 %v632
    %v706 = vunpack.c.l.b16 %v633
    %v707 = vunpack.c.l.b16 %v634
    %v708 = vunpack.c.l.b16 %v635
    %v709 = vunpack.c.l.b16 %v636
    %v710 = vpack.c.b16 %v679, %v678
    %v711 = vpack.c.b16 %v681, %v680
    %v712 = vpack.c.b16 %v683, %v682
    %v713 = vpack.c.b16 %v685, %v684
    %v714 = vpack.c.b16 %v687, %v686
    %v715 = vpack.c.b16 %v689, %v688
    %v716 = vpack.c.b16 %v691, %v690
    %v717 = vpack.c.b16 %v693, %v692
    %v718 = vpack.c.b16 %v695, %v694
    %v719 = vpack.c.b16 %v697, %v696
    %v720 = vpack.c.b16 %v699, %v698
    %v721 = vpack.c.b16 %v701, %v700
    %v722 = vpack.c.b16 %v703, %v702
    %v723 = vpack.c.b16 %v705, %v704
    %v724 = vpack.c.b16 %v707, %v706
    %v725 = vpack.c.b16 %v709, %v708
    %742 = vmatprep.subr.bf16.mxu0 0
    %743 = vmatpush1.bf16.msra.mxu0 %v710
    %744 = vmatprep.subr.bf16.mxu0 0
    %745 = vmatpush1.bf16.msra.mxu0 %v711
    %746 = vmatprep.subr.bf16.mxu0 0
    %747 = vmatpush1.bf16.msra.mxu0 %v712
    %748 = vmatprep.subr.bf16.mxu0 0
    %749 = vmatpush1.bf16.msra.mxu0 %v713
    %750 = vmatprep.subr.bf16.mxu0 0
    %751 = vmatpush1.bf16.msra.mxu0 %v714
    %752 = vmatprep.subr.bf16.mxu0 0
    %753 = vmatpush1.bf16.msra.mxu0 %v715
    %754 = vmatprep.subr.bf16.mxu0 0
    %755 = vmatpush1.bf16.msra.mxu0 %v716
    %756 = vmatprep.subr.bf16.mxu0 0
    %757 = vmatpush1.bf16.msra.mxu0 %v717
    %758 = vmatprep.subr.bf16.mxu0 0
    %759 = vmatpush1.bf16.msra.mxu0 %v718
    %760 = vmatprep.subr.bf16.mxu0 0
    %761 = vmatpush1.bf16.msra.mxu0 %v719
    %762 = vmatprep.subr.bf16.mxu0 0
    %763 = vmatpush1.bf16.msra.mxu0 %v720
    %764 = vmatprep.subr.bf16.mxu0 0
    %765 = vmatpush1.bf16.msra.mxu0 %v721
    %766 = vmatprep.subr.bf16.mxu0 0
    %767 = vmatpush1.bf16.msra.mxu0 %v722
    %768 = vmatprep.subr.bf16.mxu0 0
    %769 = vmatpush1.bf16.msra.mxu0 %v723
    %770 = vmatprep.subr.bf16.mxu0 0
    %771 = vmatpush1.bf16.msra.mxu0 %v724
    %772 = vmatprep.subr.bf16.mxu0 0
    %773 = vmatpush1.bf16.msra.mxu0 %v725
    %774 = vmatprep.mubr.bf16.mxu0 %v639
    %775 = vmatmul.mubr.bf16.gmra.mrb[0].mxu0 %v638
    %v776 = vpop.f32.mrb[0].mxu0
    %v777 = vadd.f32 %v644, %v776
    %v778 = vpop.f32.mrb[0].mxu0
    %v779 = vpop.f32.mrb[0].mxu0
    %v780 = vadd.f32 %v644, %v779
    %v781 = vpop.f32.mrb[0].mxu0
    %782 = vdwg.mxu0
    %vm783 = vcmp.gt.f32.partialorder %v777, 0.0
    %vm784 = vcmp.gt.f32.partialorder %v780, 0.0
    %v785 = vmul.f32 %v777, 1.442695
    %v786 = vpow.pop %v785
    %v787 = vmul.f32 %v780, 1.442695
    %v788 = vpow.pop %v787
    %v789 = vsub.f32 %v786, 1.0
    %v790 = vsub.f32 %v788, 1.0
    %v791 = vmul.f32 %v789, 1.6732632
    %v792 = vmul.f32 %v790, 1.6732632
    %v793 = vsel %vm783, %v777, %v791
    %v794 = vsel %vm784, %v780, %v792
    %v795 = vmul.f32 %v793, 1.050701
    %v796 = vmul.f32 %v794, 1.050701
    %v797 = vld [vmem:[#allocation8] sm:$0xff]
    %v798 = vld [vmem:[#allocation8 + $0x8] sm:$0xff]
    %v799 = vld [vmem:[#allocation8 + $0x10] sm:$0xff]
    %v800 = vld [vmem:[#allocation8 + $0x18] sm:$0xff]
    %v801 = vld [vmem:[#allocation8 + $0x20] sm:$0xff]
    %v802 = vld [vmem:[#allocation8 + $0x28] sm:$0xff]
    %v803 = vld [vmem:[#allocation8 + $0x30] sm:$0xff]
    %v804 = vld [vmem:[#allocation8 + $0x38] sm:$0xff]
    %v805 = vld [vmem:[#allocation8 + $0x40] sm:$0xff]
    %v806 = vld [vmem:[#allocation8 + $0x48] sm:$0xff]
    %v807 = vld [vmem:[#allocation8 + $0x50] sm:$0xff]
    %v808 = vld [vmem:[#allocation8 + $0x58] sm:$0xff]
    %v809 = vld [vmem:[#allocation8 + $0x60] sm:$0xff]
    %v810 = vld [vmem:[#allocation8 + $0x68] sm:$0xff]
    %v811 = vld [vmem:[#allocation8 + $0x70] sm:$0xff]
    %v812 = vld [vmem:[#allocation8 + $0x78] sm:$0xff]
    %v813 = vld [vmem:[#allocation8 + $0x80] sm:$0xff]
    %v814 = vld [vmem:[#allocation8 + $0x88] sm:$0xff]
    %v815 = vld [vmem:[#allocation8 + $0x90] sm:$0xff]
    %v816 = vld [vmem:[#allocation8 + $0x98] sm:$0xff]
    %v817 = vld [vmem:[#allocation8 + $0xa0] sm:$0xff]
    %v818 = vld [vmem:[#allocation8 + $0xa8] sm:$0xff]
    %v819 = vld [vmem:[#allocation8 + $0xb0] sm:$0xff]
    %v820 = vld [vmem:[#allocation8 + $0xb8] sm:$0xff]
    %v821 = vld [vmem:[#allocation8 + $0xc0] sm:$0xff]
    %v822 = vld [vmem:[#allocation8 + $0xc8] sm:$0xff]
    %v823 = vld [vmem:[#allocation8 + $0xd0] sm:$0xff]
    %v824 = vld [vmem:[#allocation8 + $0xd8] sm:$0xff]
    %v825 = vld [vmem:[#allocation8 + $0xe0] sm:$0xff]
    %v826 = vld [vmem:[#allocation8 + $0xe8] sm:$0xff]
    %v827 = vld [vmem:[#allocation8 + $0xf0] sm:$0xff]
    %v828 = vld [vmem:[#allocation8 + $0xf8] sm:$0xff]
    %v829 = vld [vmem:[%s6] sm:$0xf]
    %v830 = vpack.c.bf16 %v796, %v795
    %v832 = vlaneseq
    %v833 = vshrl.u32 %v832, 7
    %v834 = vsub.s32 0, %v833
    %v835 = vrot.slane %v829, %v834
    %v836 = vlaneseq
    %v837 = vshrl.u32 %v836, 7
    %v838 = vsub.s32 1, %v837
    %v839 = vrot.slane %v829, %v838
    %v840 = vlaneseq
    %v841 = vshrl.u32 %v840, 7
    %v842 = vsub.s32 2, %v841
    %v843 = vrot.slane %v829, %v842
    %v844 = vlaneseq
    %v845 = vshrl.u32 %v844, 7
    %v846 = vsub.s32 3, %v845
    %v847 = vrot.slane %v829, %v846
    %v884 = vunpack.c.l.b16 %v797
    %v885 = vunpack.c.h.b16 %v797
    %v886 = vunpack.c.l.b16 %v798
    %v887 = vunpack.c.h.b16 %v798
    %v888 = vunpack.c.l.b16 %v799
    %v889 = vunpack.c.h.b16 %v799
    %v890 = vunpack.c.l.b16 %v800
    %v891 = vunpack.c.h.b16 %v800
    %v892 = vunpack.c.l.b16 %v801
    %v893 = vunpack.c.h.b16 %v801
    %v894 = vunpack.c.l.b16 %v802
    %v895 = vunpack.c.h.b16 %v802
    %v896 = vunpack.c.l.b16 %v803
    %v897 = vunpack.c.h.b16 %v803
    %v898 = vunpack.c.l.b16 %v804
    %v899 = vunpack.c.h.b16 %v804
    %v900 = vunpack.c.l.b16 %v805
    %v901 = vunpack.c.h.b16 %v805
    %v902 = vunpack.c.l.b16 %v806
    %v903 = vunpack.c.h.b16 %v806
    %v904 = vunpack.c.l.b16 %v807
    %v905 = vunpack.c.h.b16 %v807
    %v906 = vunpack.c.l.b16 %v808
    %v907 = vunpack.c.h.b16 %v808
    %v908 = vunpack.c.l.b16 %v809
    %v909 = vunpack.c.h.b16 %v809
    %v910 = vunpack.c.l.b16 %v810
    %v911 = vunpack.c.h.b16 %v810
    %v912 = vunpack.c.l.b16 %v811
    %v913 = vunpack.c.h.b16 %v811
    %v914 = vunpack.c.l.b16 %v812
    %v915 = vunpack.c.h.b16 %v812
    %v916 = vunpack.c.l.b16 %v813
    %v917 = vunpack.c.h.b16 %v813
    %v918 = vunpack.c.l.b16 %v814
    %v919 = vunpack.c.h.b16 %v814
    %v920 = vunpack.c.l.b16 %v815
    %v921 = vunpack.c.h.b16 %v815
    %v922 = vunpack.c.l.b16 %v816
    %v923 = vunpack.c.h.b16 %v816
    %v924 = vunpack.c.l.b16 %v817
    %v925 = vunpack.c.h.b16 %v817
    %v926 = vunpack.c.l.b16 %v818
    %v927 = vunpack.c.h.b16 %v818
    %v928 = vunpack.c.l.b16 %v819
    %v929 = vunpack.c.h.b16 %v819
    %v930 = vunpack.c.l.b16 %v820
    %v931 = vunpack.c.h.b16 %v820
    %v932 = vunpack.c.l.b16 %v821
    %v933 = vunpack.c.h.b16 %v821
    %v934 = vunpack.c.l.b16 %v822
    %v935 = vunpack.c.h.b16 %v822
    %v936 = vunpack.c.l.b16 %v823
    %v937 = vunpack.c.h.b16 %v823
    %v938 = vunpack.c.l.b16 %v824
    %v939 = vunpack.c.h.b16 %v824
    %v940 = vunpack.c.l.b16 %v825
    %v941 = vunpack.c.h.b16 %v825
    %v942 = vunpack.c.l.b16 %v826
    %v943 = vunpack.c.h.b16 %v826
    %v944 = vunpack.c.l.b16 %v827
    %v945 = vunpack.c.h.b16 %v827
    %v946 = vunpack.c.l.b16 %v828
    %v947 = vunpack.c.h.b16 %v828
    %v948 = vpack.c.b16 %v888, %v884
    %v949 = vpack.c.b16 %v889, %v885
    %v950 = vpack.c.b16 %v890, %v886
    %v951 = vpack.c.b16 %v891, %v887
    %v952 = vpack.c.b16 %v896, %v892
    %v953 = vpack.c.b16 %v897, %v893
    %v954 = vpack.c.b16 %v898, %v894
    %v955 = vpack.c.b16 %v899, %v895
    %v956 = vpack.c.b16 %v904, %v900
    %v957 = vpack.c.b16 %v905, %v901
    %v958 = vpack.c.b16 %v906, %v902
    %v959 = vpack.c.b16 %v907, %v903
    %v960 = vpack.c.b16 %v912, %v908
    %v961 = vpack.c.b16 %v913, %v909
    %v962 = vpack.c.b16 %v914, %v910
    %v963 = vpack.c.b16 %v915, %v911
    %v964 = vpack.c.b16 %v920, %v916
    %v965 = vpack.c.b16 %v921, %v917
    %v966 = vpack.c.b16 %v922, %v918
    %v967 = vpack.c.b16 %v923, %v919
    %v968 = vpack.c.b16 %v928, %v924
    %v969 = vpack.c.b16 %v929, %v925
    %v970 = vpack.c.b16 %v930, %v926
    %v971 = vpack.c.b16 %v931, %v927
    %v972 = vpack.c.b16 %v936, %v932
    %v973 = vpack.c.b16 %v937, %v933
    %v974 = vpack.c.b16 %v938, %v934
    %v975 = vpack.c.b16 %v939, %v935
    %v976 = vpack.c.b16 %v944, %v940
    %v977 = vpack.c.b16 %v945, %v941
    %v978 = vpack.c.b16 %v946, %v942
    %v979 = vpack.c.b16 %v947, %v943
    %1012 = vmatprep.subr.bf16.mxu0 %v949
    %1013 = vmatpush1.bf16.msra.mxu0 %v948
    %1014 = vmatprep.subr.bf16.mxu0 %v953
    %1015 = vmatpush1.bf16.msra.mxu0 %v952
    %1016 = vmatprep.subr.bf16.mxu0 %v957
    %1017 = vmatpush1.bf16.msra.mxu0 %v956
    %1018 = vmatprep.subr.bf16.mxu0 %v961
    %1019 = vmatpush1.bf16.msra.mxu0 %v960
    %1020 = vmatprep.subr.bf16.mxu0 %v965
    %1021 = vmatpush1.bf16.msra.mxu0 %v964
    %1022 = vmatprep.subr.bf16.mxu0 %v969
    %1023 = vmatpush1.bf16.msra.mxu0 %v968
    %1024 = vmatprep.subr.bf16.mxu0 %v973
    %1025 = vmatpush1.bf16.msra.mxu0 %v972
    %1026 = vmatprep.subr.bf16.mxu0 %v977
    %1027 = vmatpush1.bf16.msra.mxu0 %v976
    %1028 = vmatprep.subr.bf16.mxu0 0
    %1029 = vmatpush1.bf16.msra.mxu0 0
    %1030 = vmatprep.subr.bf16.mxu0 0
    %1031 = vmatpush1.bf16.msra.mxu0 0
    %1032 = vmatprep.subr.bf16.mxu0 0
    %1033 = vmatpush1.bf16.msra.mxu0 0
    %1034 = vmatprep.subr.bf16.mxu0 0
    %1035 = vmatpush1.bf16.msra.mxu0 0
    %1036 = vmatprep.subr.bf16.mxu0 0
    %1037 = vmatpush1.bf16.msra.mxu0 0
    %1038 = vmatprep.subr.bf16.mxu0 0
    %1039 = vmatpush1.bf16.msra.mxu0 0
    %1040 = vmatprep.subr.bf16.mxu0 0
    %1041 = vmatpush1.bf16.msra.mxu0 0
    %1042 = vmatprep.subr.bf16.mxu0 0
    %1043 = vmatpush1.bf16.msra.mxu0 0
    %1044 = vmatprep.mubr.bf16.mxu0 0
    %1045 = vmatmul.mubr.bf16.gmra.mrb[0].mxu0 %v830
    %v1046 = vpop.f32.mrb[0].mxu0
    %v1047 = vadd.f32 %v835, %v1046
    %v1048 = vpop.f32.mrb[0].mxu0
    %v1049 = vadd.f32 %v839, %v1048
    %v1050 = vpop.f32.mrb[0].mxu0
    %v1051 = vadd.f32 %v835, %v1050
    %v1052 = vpop.f32.mrb[0].mxu0
    %v1053 = vadd.f32 %v839, %v1052
    %1054 = vdwg.mxu0
    %1055 = vmatprep.subr.bf16.mxu0 %v951
    %1056 = vmatpush1.bf16.msra.mxu0 %v950
    %1057 = vmatprep.subr.bf16.mxu0 %v955
    %1058 = vmatpush1.bf16.msra.mxu0 %v954
    %1059 = vmatprep.subr.bf16.mxu0 %v959
    %1060 = vmatpush1.bf16.msra.mxu0 %v958
    %1061 = vmatprep.subr.bf16.mxu0 %v963
    %1062 = vmatpush1.bf16.msra.mxu0 %v962
    %1063 = vmatprep.subr.bf16.mxu0 %v967
    %1064 = vmatpush1.bf16.msra.mxu0 %v966
    %1065 = vmatprep.subr.bf16.mxu0 %v971
    %1066 = vmatpush1.bf16.msra.mxu0 %v970
    %1067 = vmatprep.subr.bf16.mxu0 %v975
    %1068 = vmatpush1.bf16.msra.mxu0 %v974
    %1069 = vmatprep.subr.bf16.mxu0 %v979
    %1070 = vmatpush1.bf16.msra.mxu0 %v978
    %1071 = vmatprep.subr.bf16.mxu0 0
    %1072 = vmatpush1.bf16.msra.mxu0 0
    %1073 = vmatprep.subr.bf16.mxu0 0
    %1074 = vmatpush1.bf16.msra.mxu0 0
    %1075 = vmatprep.subr.bf16.mxu0 0
    %1076 = vmatpush1.bf16.msra.mxu0 0
    %1077 = vmatprep.subr.bf16.mxu0 0
    %1078 = vmatpush1.bf16.msra.mxu0 0
    %1079 = vmatprep.subr.bf16.mxu0 0
    %1080 = vmatpush1.bf16.msra.mxu0 0
    %1081 = vmatprep.subr.bf16.mxu0 0
    %1082 = vmatpush1.bf16.msra.mxu0 0
    %1083 = vmatprep.subr.bf16.mxu0 0
    %1084 = vmatpush1.bf16.msra.mxu0 0
    %1085 = vmatprep.subr.bf16.mxu0 0
    %1086 = vmatpush1.bf16.msra.mxu0 0
    %1087 = vmatprep.mubr.bf16.mxu0 0
    %1088 = vmatmul.mubr.bf16.gmra.mrb[0].mxu0 %v830
    %v1089 = vpop.f32.mrb[0].mxu0
    %v1090 = vadd.f32 %v843, %v1089
    %v1091 = vpop.f32.mrb[0].mxu0
    %v1092 = vadd.f32 %v847, %v1091
    %v1093 = vpop.f32.mrb[0].mxu0
    %v1094 = vadd.f32 %v843, %v1093
    %v1095 = vpop.f32.mrb[0].mxu0
    %v1096 = vadd.f32 %v847, %v1095
    %1097 = vdwg.mxu0
    %vm1098 = vcmp.gt.f32.partialorder %v1047, 0.0
    %vm1099 = vcmp.gt.f32.partialorder %v1049, 0.0
    %vm1100 = vcmp.gt.f32.partialorder %v1090, 0.0
    %vm1101 = vcmp.gt.f32.partialorder %v1092, 0.0
    %vm1102 = vcmp.gt.f32.partialorder %v1051, 0.0
    %vm1103 = vcmp.gt.f32.partialorder %v1053, 0.0
    %vm1104 = vcmp.gt.f32.partialorder %v1094, 0.0
    %vm1105 = vcmp.gt.f32.partialorder %v1096, 0.0
    %v1106 = vmul.f32 %v1047, 1.442695
    %v1107 = vpow.pop %v1106
    %v1108 = vmul.f32 %v1049, 1.442695
    %v1109 = vpow.pop %v1108
    %v1110 = vmul.f32 %v1090, 1.442695
    %v1111 = vpow.pop %v1110
    %v1112 = vmul.f32 %v1092, 1.442695
    %v1113 = vpow.pop %v1112
    %v1114 = vmul.f32 %v1051, 1.442695
    %v1115 = vpow.pop %v1114
    %v1116 = vmul.f32 %v1053, 1.442695
    %v1117 = vpow.pop %v1116
    %v1118 = vmul.f32 %v1094, 1.442695
    %v1119 = vpow.pop %v1118
    %v1120 = vmul.f32 %v1096, 1.442695
    %v1121 = vpow.pop %v1120
    %v1122 = vsub.f32 %v1107, 1.0
    %v1123 = vsub.f32 %v1109, 1.0
    %v1124 = vsub.f32 %v1111, 1.0
    %v1125 = vsub.f32 %v1113, 1.0
    %v1126 = vsub.f32 %v1115, 1.0
    %v1127 = vsub.f32 %v1117, 1.0
    %v1128 = vsub.f32 %v1119, 1.0
    %v1129 = vsub.f32 %v1121, 1.0
    %v1130 = vmul.f32 %v1122, 1.6732632
    %v1131 = vmul.f32 %v1123, 1.6732632
    %v1132 = vmul.f32 %v1124, 1.6732632
    %v1133 = vmul.f32 %v1125, 1.6732632
    %v1134 = vmul.f32 %v1126, 1.6732632
    %v1135 = vmul.f32 %v1127, 1.6732632
    %v1136 = vmul.f32 %v1128, 1.6732632
    %v1137 = vmul.f32 %v1129, 1.6732632
    %v1138 = vsel %vm1098, %v1047, %v1130
    %v1139 = vsel %vm1099, %v1049, %v1131
    %v1140 = vsel %vm1100, %v1090, %v1132
    %v1141 = vsel %vm1101, %v1092, %v1133
    %v1142 = vsel %vm1102, %v1051, %v1134
    %v1143 = vsel %vm1103, %v1053, %v1135
    %v1144 = vsel %vm1104, %v1094, %v1136
    %v1145 = vsel %vm1105, %v1096, %v1137
    %v1146 = vmul.f32 %v1138, 1.050701
    %v1147 = vmul.f32 %v1139, 1.050701
    %v1148 = vmul.f32 %v1140, 1.050701
    %v1149 = vmul.f32 %v1141, 1.050701
    %v1150 = vmul.f32 %v1142, 1.050701
    %v1151 = vmul.f32 %v1143, 1.050701
    %v1152 = vmul.f32 %v1144, 1.050701
    %v1153 = vmul.f32 %v1145, 1.050701
    %1154 = vst [vmem:[#allocation10] sm:$0xff] %v1146
    %1155 = vst [vmem:[#allocation10 + $0x8] sm:$0xff] %v1147
    %1156 = vst [vmem:[#allocation10 + $0x10] sm:$0xff] %v1148
    %1157 = vst [vmem:[#allocation10 + $0x18] sm:$0xff] %v1149
    %1158 = vst [vmem:[#allocation10 + $0x20] sm:$0xff] %v1150
    %1159 = vst [vmem:[#allocation10 + $0x28] sm:$0xff] %v1151
    %1160 = vst [vmem:[#allocation10 + $0x30] sm:$0xff] %v1152
    %1161 = vst [vmem:[#allocation10 + $0x38] sm:$0xff] %v1153
    // Predicated region
    $region46: #{tpu_custom_call.1} parent=1 // pred_check
      _
    $region47: #{tpu_custom_call.1} parent=1 // pred_check_branch
      %1163 = sbr.rel (0) target = $region49
    $region48: #{tpu_custom_call.1} parent=1 // pred_region
      %s1165 = ssub.s32 1024, 1024
      %1166 = vsyncadd [#allocation4], %s1165
      %s1167 = sshll.u32 [#allocation10], 4
      %s1168 = int_to_ptr.vmem [resolvable:$true] %s1167
      %1173 = dma.vmem_to_hbm [thread:$0]  %s1168, 1024, %s7, [#allocation4], 512, 512, 32
    $region49: #{tpu_custom_call.1} parent=1 // pred_fallthru
      _
    // Predicated region
    $region50: #{tpu_custom_call.1} parent=1 // pred_check
      _
    $region51: #{tpu_custom_call.1} parent=1 // pred_check_branch
      %1175 = sbr.rel (0) target = $region53
    $region52: #{tpu_custom_call.1} parent=1 // pred_region
      %1176 = dma.done [#allocation4], 1024
    $region53: #{tpu_custom_call.1} parent=1 // pred_fallthru
      _
    %1177 = vsyncpa [#allocation3], 1
    %1178 = vsyncpa [#allocation6], 1
    %1179 = vsyncpa [#allocation9], 1
    %1180 = vsyncpa [#allocation4], 1

</llo_original>
